<compile_context>
chip_gen: v6e
topology: v6e:2x2x1
jax: 0.10.0
libtpu: 0.0.40
codegen_flags: <defaults>
</compile_context>

<pallas_src>
import functools

import jax
import jax.numpy as jnp
from jax.experimental import pallas as pl
from jax.experimental.pallas import tpu as pltpu


# ---------------------------------------------------------------------------
# Pass 1: per-(batch, H-tile) partial channel sums / sums-of-squares.
# grid = (N, H // TH), both axes "parallel".  Group mean / rstd are finalized
# on the tiny (N, 2, C) result in plain JAX in the wrapper.
# ---------------------------------------------------------------------------
def _partial_stats_kernel(x_ref, o_ref):
    TH, W, C = x_ref.shape[1], x_ref.shape[2], x_ref.shape[3]
    x = x_ref[0].reshape(TH * W, C).astype(jnp.float32)
    p_sum = jnp.sum(x, axis=0, keepdims=True)          # (1, C)
    p_sq = jnp.sum(x * x, axis=0, keepdims=True)       # (1, C)
    o_ref[0, 0] = jnp.concatenate([p_sum, p_sq], axis=0)


# ---------------------------------------------------------------------------
# Pass 2: fused normalize + shared 3x3 conv + SiLU + (gamma|beta) 3x3 conv +
# SPADE modulation, one (batch, H-tile) per grid step.
#
# The upsampled segmap is passed once per batch with a 2-row / 1-col zero halo
# so each tile can recompute its own 1-row emb halo locally (no emb in HBM).
# Convs are im2col'd: 3 dx-shifted slices folded into the channel axis, then 3
# free leading-axis dy slices -> a single matmul with K = 9*Cin.
# ---------------------------------------------------------------------------
def _spade_fused_kernel(stats_ref, x_ref, segp_ref, wsh_ref, bsh_ref,
                        wgb_ref, bgb_ref, o_ref):
    h = pl.program_id(1)
    TH, W, C = x_ref.shape[1], x_ref.shape[2], x_ref.shape[3]
    Cs = segp_ref.shape[3]
    Ce = bsh_ref.shape[1]
    H = segp_ref.shape[1] - 4          # unpadded image height
    RS = TH + 4                        # segmap strip rows (2-row halo each side)
    RE = TH + 2                        # emb strip rows (1-row halo each side)

    # ---- shared 3x3 conv + SiLU on an (RE, W) strip of the upsampled segmap ---
    start = pl.multiple_of(h * TH, TH)
    seg_strip = segp_ref[0, pl.ds(start, RS), :, :]       # (RS, W+2, Cs) f32

    seg_dx = jnp.concatenate(                              # fold dx taps into K
        [seg_strip[:, dx:dx + W, :] for dx in range(3)], axis=-1)   # (RS, W, 3*Cs)
    seg_pat = jnp.concatenate(                             # fold dy taps (free slices)
        [seg_dx[dy:dy + RE] for dy in range(3)], axis=-1)           # (RE, W, 9*Cs)
    lhs = seg_pat.reshape(RE * W, 9 * Cs).astype(jnp.bfloat16)
    emb = jnp.dot(lhs, wsh_ref[...], preferred_element_type=jnp.float32)
    emb = emb + bsh_ref[...].astype(jnp.float32)
    emb = emb * jax.nn.sigmoid(emb)                        # SiLU (f32 VPU/EUP)
    emb = emb.reshape(RE, W, Ce)

    # emb halo rows that fall outside [0, H) are the gamma/beta conv's zero pad.
    row_id = h * TH - 1 + jax.lax.broadcasted_iota(jnp.int32, (RE, 1, 1), 0)
    emb = jnp.where((row_id >= 0) & (row_id < H), emb, 0.0)

    # 1-column zero halo for the gamma/beta conv.
    zcol = jnp.zeros((RE, 1, Ce), jnp.float32)
    emb_p = jnp.concatenate([zcol, emb, zcol], axis=1)     # (RE, W+2, Ce)

    # ---- gamma & beta 3x3 conv: ONE matmul (weights concatenated along Cout) ---
    e_dx = jnp.concatenate(
        [emb_p[:, dx:dx + W, :] for dx in range(3)], axis=-1)       # (RE, W, 3*Ce)
    e_pat = jnp.concatenate(
        [e_dx[dy:dy + TH] for dy in range(3)], axis=-1)             # (TH, W, 9*Ce)
    gb = jnp.dot(e_pat.reshape(TH * W, 9 * Ce).astype(jnp.bfloat16),
                 wgb_ref[...], preferred_element_type=jnp.float32)  # (TH*W, 2C)
    gb = gb + bgb_ref[...].astype(jnp.float32)
    gamma = gb[:, :C]
    beta = gb[:, C:]

    # ---- GroupNorm normalize (stats from pass 1) + SPADE modulation ------------
    st = stats_ref[0]                                      # (2, C): [mean, rstd]
    mean = st[0:1, :]
    rstd = st[1:2, :]
    xn = (x_ref[0].reshape(TH * W, C).astype(jnp.float32) - mean) * rstd
    out = xn * (1.0 + gamma) + beta
    o_ref[0] = out.reshape(TH, W, C).astype(o_ref.dtype)


# ---------------------------------------------------------------------------
# Wrappers
# ---------------------------------------------------------------------------
def _pick_tile_h(H, W, C, budget_bytes=2 << 20):
    for t in range(H, 0, -1):
        if H % t == 0 and t * W * C * 4 <= budget_bytes:
            return t
    return 1


def pack_spade_params(w_shared, b_shared, w_gamma, b_gamma, w_beta, b_beta):
    """Pack PyTorch-layout (Cout, Cin, 3, 3) conv weights into kernel layout:
    im2col weights (9*Cin, Cout) in bf16, gamma|beta concatenated along Cout."""
    def im2col_w(w_oihw):
        w = jnp.transpose(w_oihw, (2, 3, 1, 0))            # -> (3, 3, Cin, Cout)
        kh, kw, ci, co = w.shape
        return w.reshape(kh * kw * ci, co)

    wg = im2col_w(w_gamma)
    wb = im2col_w(w_beta)
    return {
        "w_shared": im2col_w(w_shared).astype(jnp.bfloat16),
        "b_shared": b_shared.reshape(1, -1).astype(jnp.float32),
        "w_gb": jnp.concatenate([wg, wb], axis=1).astype(jnp.bfloat16),
        "b_gb": jnp.concatenate([b_gamma, b_beta]).reshape(1, -1).astype(jnp.float32),
    }


def spade_forward(x_nchw, segmap_nchw, params, nc, eps=1e-5, tile_h=None):
    """SPADE forward. Inputs/outputs are NCHW (PyTorch convention), f32."""
    x = jnp.transpose(x_nchw, (0, 2, 3, 1))                # NHWC
    seg = jnp.transpose(segmap_nchw, (0, 2, 3, 1))         # NHWC
    N, H, W, C = x.shape
    Hs, Ws, Cs = seg.shape[1], seg.shape[2], seg.shape[3]
    Ce = params["w_shared"].shape[1]
    assert C % nc == 0

    if tile_h is None:
        tile_h = _pick_tile_h(H, W, C)
    assert H % tile_h == 0, "tile_h must divide H"
    nH = H // tile_h

    # ---- pass 1: partial channel sums, finalized to group mean/rstd in JAX ----
    psum = pl.pallas_call(
        _partial_stats_kernel,
        out_shape=jax.ShapeDtypeStruct((N, nH, 2, C), jnp.float32),
        grid=(N, nH),
        in_specs=[pl.BlockSpec((1, tile_h, W, C), lambda n, h: (n, h, 0, 0))],
        out_specs=pl.BlockSpec((1, 1, 2, C), lambda n, h: (n, h, 0, 0)),
        compiler_params=pltpu.CompilerParams(
            dimension_semantics=("parallel", "parallel")),
    )(x)

    cpg = C // nc
    tot = jnp.sum(psum, axis=1) * (1.0 / (H * W))          # (N, 2, C): [mean, E[x^2]]
    mean_g = tot[:, 0, :].reshape(N, nc, cpg).mean(axis=2)  # (N, nc)
    ex2_g = tot[:, 1, :].reshape(N, nc, cpg).mean(axis=2)
    # TODO(synk): E[x^2]-mean^2 in f32 can lose precision for very large-mean
    # inputs; a Welford / two-pass variant would need another full read of x.
    var_g = jnp.maximum(ex2_g - mean_g * mean_g, 0.0)
    rstd_g = jax.lax.rsqrt(var_g + eps)
    mean = jnp.repeat(mean_g, cpg, axis=1)                  # (N, C)
    rstd = jnp.repeat(rstd_g, cpg, axis=1)
    stats = jnp.stack([mean, rstd], axis=1)                 # (N, 2, C)

    # ---- nearest upsample of the segmap (no gather for integer ratios) ---------
    if H % Hs == 0 and W % Ws == 0:
        seg_up = jnp.repeat(jnp.repeat(seg, H // Hs, axis=1), W // Ws, axis=2)
    else:
        # TODO(synk): non-integer nearest ratios fall back to an XLA gather.
        ri = (jnp.arange(H) * Hs) // H
        ci = (jnp.arange(W) * Ws) // W
        seg_up = seg[:, ri][:, :, ci]
    # 2-row / 1-col zero halo so each H-tile can compute its own emb halo rows.
    segp = jnp.pad(seg_up, ((0, 0), (2, 2), (1, 1), (0, 0)))

    # ---- pass 2: fused normalize + conv/SiLU + gamma/beta conv + modulation ----
    out = pl.pallas_call(
        _spade_fused_kernel,
        out_shape=jax.ShapeDtypeStruct((N, H, W, C), jnp.float32),
        grid=(N, nH),
        in_specs=[pl.BlockSpec((1, 2, C), lambda n, h: (n, 0, 0)),
                  pl.BlockSpec((1, tile_h, W, C), lambda n, h: (n, h, 0, 0)),
                  pl.BlockSpec((1, H + 4, W + 2, Cs), lambda n, h: (n, 0, 0, 0)),
                  pl.BlockSpec((9 * Cs, Ce), lambda n, h: (0, 0)),
                  pl.BlockSpec((1, Ce), lambda n, h: (0, 0)),
                  pl.BlockSpec((9 * Ce, 2 * C), lambda n, h: (0, 0)),
                  pl.BlockSpec((1, 2 * C), lambda n, h: (0, 0))],
        out_specs=pl.BlockSpec((1, tile_h, W, C), lambda n, h: (n, h, 0, 0)),
        compiler_params=pltpu.CompilerParams(
            dimension_semantics=("parallel", "parallel")),
    )(stats, x, segp, params["w_shared"], params["b_shared"],
      params["w_gb"], params["b_gb"])

    return jnp.transpose(out, (0, 3, 1, 2))                # back to NCHW


# ---------------------------------------------------------------------------
# Pure-JAX reference (matches the PyTorch module) for a sanity check.
# ---------------------------------------------------------------------------
def spade_reference(x, segmap, w_shared, b_shared, w_gamma, b_gamma,
                    w_beta, b_beta, nc, eps=1e-5):
    N, C, H, W = x.shape
    xg = x.reshape(N, nc, C // nc, H, W)
    mean = xg.mean(axis=(2, 3, 4), keepdims=True)
    var = ((xg - mean) ** 2).mean(axis=(2, 3, 4), keepdims=True)
    xn = ((xg - mean) * jax.lax.rsqrt(var + eps)).reshape(N, C, H, W)

    Hs, Ws = segmap.shape[2], segmap.shape[3]
    ri = (jnp.arange(H) * Hs) // H
    ci = (jnp.arange(W) * Ws) // W
    seg_up = segmap[:, :, ri][:, :, :, ci]

    def conv(v, w, b):
        y = jax.lax.conv_general_dilated(
            v, w, window_strides=(1, 1), padding=((1, 1), (1, 1)),
            dimension_numbers=("NCHW", "OIHW", "NCHW"))
        return y + b[None, :, None, None]

    emb = conv(seg_up, w_shared, b_shared)
    emb = emb * jax.nn.sigmoid(emb)
    gamma = conv(emb, w_gamma, b_gamma)
    beta = conv(emb, w_beta, b_beta)
    return xn * (1.0 + gamma) + beta


if __name__ == "__main__":
    key = jax.random.PRNGKey(0)
    N, C, H, W = 2, 8, 16, 16        # x: (batch, in_channels, H, W)
    Cs, Ce, nc = 3, 16, 2            # segmap_channels, segmap_emb_channels, groups
    Hs, Ws = 8, 8                    # segmap at half resolution (exercises upsample)

    keys = jax.random.split(key, 8)
    x = jax.random.normal(keys[0], (N, C, H, W), jnp.float32)
    segmap = jax.random.normal(keys[1], (N, Cs, Hs, Ws), jnp.float32)

    # PyTorch-layout (Cout, Cin, 3, 3) conv weights, deterministic.
    w_shared = 0.1 * jax.random.normal(keys[2], (Ce, Cs, 3, 3), jnp.float32)
    b_shared = 0.1 * jax.random.normal(keys[3], (Ce,), jnp.float32)
    w_gamma = 0.1 * jax.random.normal(keys[4], (C, Ce, 3, 3), jnp.float32)
    b_gamma = 0.1 * jax.random.normal(keys[5], (C,), jnp.float32)
    w_beta = 0.1 * jax.random.normal(keys[6], (C, Ce, 3, 3), jnp.float32)
    b_beta = 0.1 * jax.random.normal(keys[7], (C,), jnp.float32)

    params = pack_spade_params(w_shared, b_shared, w_gamma, b_gamma, w_beta, b_beta)

    fwd = jax.jit(functools.partial(spade_forward, nc=nc, eps=1e-5, tile_h=8))
    out = jax.block_until_ready(fwd(x, segmap, params))
    assert out.shape == (N, C, H, W) and out.dtype == jnp.float32

    ref = spade_reference(x, segmap, w_shared, b_shared, w_gamma, b_gamma,
                          w_beta, b_beta, nc=nc)
    err = float(jnp.max(jnp.abs(out - ref)))
    assert err < 1e-1, f"max abs error vs reference: {err}"
    print("KERNEL_OK")
</pallas_src>

<mosaic_0001>
module attributes {stable_mosaic.version = 11 : i64} {
  func.func @_partial_stats_kernel(%arg0: i32, %arg1: i32, %arg2: memref<1x8x16x8xf32, #tpu.memory_space<vmem>>, %arg3: memref<1x1x2x8xf32, #tpu.memory_space<vmem>>) attributes {dimension_semantics = [#tpu.dimension_semantics<parallel>, #tpu.dimension_semantics<parallel>], iteration_bounds = array<i64: 2, 2>, scalar_prefetch = 0 : i64, scratch_operands = 0 : i64, tpu.core_type = #tpu.core_type<tc>, window_params = [{transform_indices = @transform_0, window_bounds = array<i64: 1, 8, 16, 8>}, {transform_indices = @transform_1, window_bounds = array<i64: 1, 1, 2, 8>}]} {
    %c0 = arith.constant 0 : index
    %c0_0 = arith.constant 0 : index
    %c0_1 = arith.constant 0 : index
    %c0_2 = arith.constant 0 : index
    %0 = vector.load %arg2[%c0, %c0_0, %c0_1, %c0_2] : memref<1x8x16x8xf32, #tpu.memory_space<vmem>>, vector<1x8x16x8xf32>
    %1 = vector.shape_cast %0 : vector<1x8x16x8xf32> to vector<8x16x8xf32>
    %2 = vector.shape_cast %1 : vector<8x16x8xf32> to vector<128x8xf32>
    %cst = arith.constant dense<0.000000e+00> : vector<8xf32>
    %3 = vector.multi_reduction <add>, %2, %cst [0] : vector<128x8xf32> to vector<8xf32>
    %4 = vector.shape_cast %3 : vector<8xf32> to vector<1x8xf32>
    %5 = arith.mulf %2, %2 : vector<128x8xf32>
    %cst_3 = arith.constant dense<0.000000e+00> : vector<8xf32>
    %6 = vector.multi_reduction <add>, %5, %cst_3 [0] : vector<128x8xf32> to vector<8xf32>
    %7 = vector.shape_cast %6 : vector<8xf32> to vector<1x8xf32>
    %8 = tpu.concatenate %4, %7 in 0 : vector<1x8xf32>, vector<1x8xf32> -> vector<2x8xf32>
    %c0_4 = arith.constant 0 : index
    %c0_5 = arith.constant 0 : index
    %c0_6 = arith.constant 0 : index
    %c0_7 = arith.constant 0 : index
    %9 = vector.load %arg3[%c0_4, %c0_5, %c0_6, %c0_7] : memref<1x1x2x8xf32, #tpu.memory_space<vmem>>, vector<1x1x2x8xf32>
    %10 = vector.shape_cast %9 : vector<1x1x2x8xf32> to vector<2x8xf32>
    %11 = vector.shape_cast %8 : vector<2x8xf32> to vector<1x1x2x8xf32>
    tpu.vector_store %arg3[%c0_4, %c0_5, %c0_6, %c0_7], %11 {strides = array<i32>} : memref<1x1x2x8xf32, #tpu.memory_space<vmem>>, vector<1x1x2x8xf32>,
    return
  }
  func.func @transform_0(%arg0: i32, %arg1: i32) -> (i32, i32, i32, i32) {
    %c0_i32 = arith.constant 0 : i32
    %c0_i32_0 = arith.constant 0 : i32
    %c0_i32_1 = arith.constant 0 : i32
    return %arg0, %arg1, %c0_i32, %c0_i32_0 : i32, i32, i32, i32
  }
  func.func @transform_1(%arg0: i32, %arg1: i32) -> (i32, i32, i32, i32) {
    %c0_i32 = arith.constant 0 : i32
    %c0_i32_0 = arith.constant 0 : i32
    %c0_i32_1 = arith.constant 0 : i32
    return %arg0, %arg1, %c0_i32, %c0_i32_0 : i32, i32, i32, i32
  }
}

module attributes {stable_mosaic.version = 11 : i64} {
  func.func @_spade_fused_kernel(%arg0: i32, %arg1: i32, %arg2: memref<1x2x8xf32, #tpu.memory_space<vmem>>, %arg3: memref<1x8x16x8xf32, #tpu.memory_space<vmem>>, %arg4: memref<1x20x18x3xf32, #tpu.memory_space<vmem>>, %arg5: memref<27x16xbf16, #tpu.memory_space<vmem>>, %arg6: memref<1x16xf32, #tpu.memory_space<vmem>>, %arg7: memref<144x16xbf16, #tpu.memory_space<vmem>>, %arg8: memref<1x16xf32, #tpu.memory_space<vmem>>, %arg9: memref<1x8x16x8xf32, #tpu.memory_space<vmem>>) attributes {dimension_semantics = [#tpu.dimension_semantics<parallel>, #tpu.dimension_semantics<parallel>], iteration_bounds = array<i64: 2, 2>, scalar_prefetch = 0 : i64, scratch_operands = 0 : i64, tpu.core_type = #tpu.core_type<tc>, window_params = [{transform_indices = @transform_0, window_bounds = array<i64: 1, 2, 8>}, {transform_indices = @transform_1, window_bounds = array<i64: 1, 8, 16, 8>}, {transform_indices = @transform_2, window_bounds = array<i64: 1, 20, 18, 3>}, {pipeline_mode = #tpu.pipeline_mode<synchronous>, transform_indices = @transform_3, window_bounds = array<i64: 27, 16>}, {pipeline_mode = #tpu.pipeline_mode<synchronous>, transform_indices = @transform_4, window_bounds = array<i64: 1, 16>}, {pipeline_mode = #tpu.pipeline_mode<synchronous>, transform_indices = @transform_5, window_bounds = array<i64: 144, 16>}, {pipeline_mode = #tpu.pipeline_mode<synchronous>, transform_indices = @transform_6, window_bounds = array<i64: 1, 16>}, {transform_indices = @transform_7, window_bounds = array<i64: 1, 8, 16, 8>}]} {
    %c8_i32 = arith.constant 8 : i32
    %0 = arith.muli %arg1, %c8_i32 : i32
    %1 = tpu.assume_multiple %0, 8 : i32
    %c0 = arith.constant 0 : index
    %2 = arith.index_cast %1 : i32 to index
    %c0_0 = arith.constant 0 : index
    %c0_1 = arith.constant 0 : index
    %3 = vector.load %arg4[%c0, %2, %c0_0, %c0_1] : memref<1x20x18x3xf32, #tpu.memory_space<vmem>>, vector<1x12x18x3xf32>
    %4 = vector.shape_cast %3 : vector<1x12x18x3xf32> to vector<12x18x3xf32>
    %5 = vector.extract_strided_slice %4 {offsets = [0, 0, 0], sizes = [12, 16, 3], strides = [1, 1, 1]} : vector<12x18x3xf32> to vector<12x16x3xf32>
    %6 = vector.extract_strided_slice %4 {offsets = [0, 1, 0], sizes = [12, 16, 3], strides = [1, 1, 1]} : vector<12x18x3xf32> to vector<12x16x3xf32>
    %7 = vector.extract_strided_slice %4 {offsets = [0, 2, 0], sizes = [12, 16, 3], strides = [1, 1, 1]} : vector<12x18x3xf32> to vector<12x16x3xf32>
    %8 = tpu.concatenate %5, %6, %7 in 2 : vector<12x16x3xf32>, vector<12x16x3xf32>, vector<12x16x3xf32> -> vector<12x16x9xf32>
    %9 = vector.extract_strided_slice %8 {offsets = [0, 0, 0], sizes = [10, 16, 9], strides = [1, 1, 1]} : vector<12x16x9xf32> to vector<10x16x9xf32>
    %10 = vector.extract_strided_slice %8 {offsets = [1, 0, 0], sizes = [10, 16, 9], strides = [1, 1, 1]} : vector<12x16x9xf32> to vector<10x16x9xf32>
    %11 = vector.extract_strided_slice %8 {offsets = [2, 0, 0], sizes = [10, 16, 9], strides = [1, 1, 1]} : vector<12x16x9xf32> to vector<10x16x9xf32>
    %12 = tpu.concatenate %9, %10, %11 in 2 : vector<10x16x9xf32>, vector<10x16x9xf32>, vector<10x16x9xf32> -> vector<10x16x27xf32>
    %13 = vector.shape_cast %12 : vector<10x16x27xf32> to vector<160x27xf32>
    %14 = arith.truncf %13 : vector<160x27xf32> to vector<160x27xbf16>
    %c0_2 = arith.constant 0 : index
    %c0_3 = arith.constant 0 : index
    %15 = vector.load %arg5[%c0_2, %c0_3] : memref<27x16xbf16, #tpu.memory_space<vmem>>, vector<27x16xbf16>
    %cst = arith.constant dense<0.000000e+00> : vector<160x16xf32>
    %16 = tpu.matmul %14, %15, %cst {dimension_numbers = #tpu.dot_dimension_numbers<[1], [0], [0], [1], [0, 0, 1, 1], [], []>} : vector<160x27xbf16>, vector<27x16xbf16>, vector<160x16xf32> -> vector<160x16xf32>
    %c0_4 = arith.constant 0 : index
    %c0_5 = arith.constant 0 : index
    %17 = vector.load %arg6[%c0_4, %c0_5] : memref<1x16xf32, #tpu.memory_space<vmem>>, vector<1x16xf32>
    %18 = vector.broadcast %17 : vector<1x16xf32> to vector<160x16xf32>
    %19 = arith.addf %16, %18 : vector<160x16xf32>
    %20 = arith.negf %19 : vector<160x16xf32>
    %21 = math.exp %20 : vector<160x16xf32>
    %cst_6 = arith.constant 1.000000e+00 : f32
    %22 = vector.broadcast %cst_6 : f32 to vector<160x16xf32>
    %23 = arith.addf %22, %21 : vector<160x16xf32>
    %24 = arith.divf %22, %23 : vector<160x16xf32>
    %25 = arith.mulf %19, %24 : vector<160x16xf32>
    %26 = vector.shape_cast %25 : vector<160x16xf32> to vector<10x16x16xf32>
    %c8_i32_7 = arith.constant 8 : i32
    %27 = arith.muli %arg1, %c8_i32_7 : i32
    %c1_i32 = arith.constant 1 : i32
    %28 = arith.subi %27, %c1_i32 : i32
    %29 = tpu.iota {dimensions = array<i32: 0>} : vector<10x1x1xi32>
    %30 = vector.broadcast %28 : i32 to vector<10x1x1xi32>
    %31 = arith.addi %30, %29 : vector<10x1x1xi32>
    %c0_i32 = arith.constant 0 : i32
    %32 = vector.broadcast %c0_i32 : i32 to vector<10x1x1xi32>
    %33 = arith.cmpi sge, %31, %32 : vector<10x1x1xi32>
    %c16_i32 = arith.constant 16 : i32
    %34 = vector.broadcast %c16_i32 : i32 to vector<10x1x1xi32>
    %35 = arith.cmpi slt, %31, %34 : vector<10x1x1xi32>
    %36 = arith.andi %33, %35 : vector<10x1x1xi1>
    %cst_8 = arith.constant 0.000000e+00 : f32
    %37 = vector.shape_cast %36 : vector<10x1x1xi1> to vector<10x1x1xi1>
    %38 = vector.broadcast %37 : vector<10x1x1xi1> to vector<10x16x16xi1>
    %39 = vector.broadcast %cst_8 : f32 to vector<10x16x16xf32>
    %40 = arith.select %38, %26, %39 : vector<10x16x16xi1>, vector<10x16x16xf32>
    %cst_9 = arith.constant 0.000000e+00 : f32
    %41 = vector.broadcast %cst_9 : f32 to vector<10x1x16xf32>
    %42 = tpu.concatenate %41, %40, %41 in 1 : vector<10x1x16xf32>, vector<10x16x16xf32>, vector<10x1x16xf32> -> vector<10x18x16xf32>
    %43 = vector.extract_strided_slice %42 {offsets = [0, 0, 0], sizes = [10, 16, 16], strides = [1, 1, 1]} : vector<10x18x16xf32> to vector<10x16x16xf32>
    %44 = vector.extract_strided_slice %42 {offsets = [0, 1, 0], sizes = [10, 16, 16], strides = [1, 1, 1]} : vector<10x18x16xf32> to vector<10x16x16xf32>
    %45 = vector.extract_strided_slice %42 {offsets = [0, 2, 0], sizes = [10, 16, 16], strides = [1, 1, 1]} : vector<10x18x16xf32> to vector<10x16x16xf32>
    %46 = tpu.concatenate %43, %44, %45 in 2 : vector<10x16x16xf32>, vector<10x16x16xf32>, vector<10x16x16xf32> -> vector<10x16x48xf32>
    %47 = vector.extract_strided_slice %46 {offsets = [0, 0, 0], sizes = [8, 16, 48], strides = [1, 1, 1]} : vector<10x16x48xf32> to vector<8x16x48xf32>
    %48 = vector.extract_strided_slice %46 {offsets = [1, 0, 0], sizes = [8, 16, 48], strides = [1, 1, 1]} : vector<10x16x48xf32> to vector<8x16x48xf32>
    %49 = vector.extract_strided_slice %46 {offsets = [2, 0, 0], sizes = [8, 16, 48], strides = [1, 1, 1]} : vector<10x16x48xf32> to vector<8x16x48xf32>
    %50 = tpu.concatenate %47, %48, %49 in 2 : vector<8x16x48xf32>, vector<8x16x48xf32>, vector<8x16x48xf32> -> vector<8x16x144xf32>
    %51 = vector.shape_cast %50 : vector<8x16x144xf32> to vector<128x144xf32>
    %52 = arith.truncf %51 : vector<128x144xf32> to vector<128x144xbf16>
    %c0_10 = arith.constant 0 : index
    %c0_11 = arith.constant 0 : index
    %53 = vector.load %arg7[%c0_10, %c0_11] : memref<144x16xbf16, #tpu.memory_space<vmem>>, vector<144x16xbf16>
    %cst_12 = arith.constant dense<0.000000e+00> : vector<128x16xf32>
    %54 = tpu.matmul %52, %53, %cst_12 {dimension_numbers = #tpu.dot_dimension_numbers<[1], [0], [0], [1], [0, 0, 1, 1], [], []>} : vector<128x144xbf16>, vector<144x16xbf16>, vector<128x16xf32> -> vector<128x16xf32>
    %c0_13 = arith.constant 0 : index
    %c0_14 = arith.constant 0 : index
    %55 = vector.load %arg8[%c0_13, %c0_14] : memref<1x16xf32, #tpu.memory_space<vmem>>, vector<1x16xf32>
    %56 = vector.broadcast %55 : vector<1x16xf32> to vector<128x16xf32>
    %57 = arith.addf %54, %56 : vector<128x16xf32>
    %58 = vector.extract_strided_slice %57 {offsets = [0, 0], sizes = [128, 8], strides = [1, 1]} : vector<128x16xf32> to vector<128x8xf32>
    %59 = vector.extract_strided_slice %57 {offsets = [0, 8], sizes = [128, 8], strides = [1, 1]} : vector<128x16xf32> to vector<128x8xf32>
    %c0_15 = arith.constant 0 : index
    %c0_16 = arith.constant 0 : index
    %c0_17 = arith.constant 0 : index
    %60 = vector.load %arg2[%c0_15, %c0_16, %c0_17] : memref<1x2x8xf32, #tpu.memory_space<vmem>>, vector<1x2x8xf32>
    %61 = vector.shape_cast %60 : vector<1x2x8xf32> to vector<2x8xf32>
    %62 = vector.extract_strided_slice %61 {offsets = [0, 0], sizes = [1, 8], strides = [1, 1]} : vector<2x8xf32> to vector<1x8xf32>
    %63 = vector.extract_strided_slice %61 {offsets = [1, 0], sizes = [1, 8], strides = [1, 1]} : vector<2x8xf32> to vector<1x8xf32>
    %c0_18 = arith.constant 0 : index
    %c0_19 = arith.constant 0 : index
    %c0_20 = arith.constant 0 : index
    %c0_21 = arith.constant 0 : index
    %64 = vector.load %arg3[%c0_18, %c0_19, %c0_20, %c0_21] : memref<1x8x16x8xf32, #tpu.memory_space<vmem>>, vector<1x8x16x8xf32>
    %65 = vector.shape_cast %64 : vector<1x8x16x8xf32> to vector<8x16x8xf32>
    %66 = vector.shape_cast %65 : vector<8x16x8xf32> to vector<128x8xf32>
    %67 = vector.broadcast %62 : vector<1x8xf32> to vector<128x8xf32>
    %68 = arith.subf %66, %67 : vector<128x8xf32>
    %69 = vector.broadcast %63 : vector<1x8xf32> to vector<128x8xf32>
    %70 = arith.mulf %68, %69 : vector<128x8xf32>
    %cst_22 = arith.constant 1.000000e+00 : f32
    %71 = vector.broadcast %cst_22 : f32 to vector<128x8xf32>
    %72 = arith.addf %71, %58 : vector<128x8xf32>
    %73 = arith.mulf %70, %72 : vector<128x8xf32>
    %74 = arith.addf %73, %59 : vector<128x8xf32>
    %75 = vector.shape_cast %74 : vector<128x8xf32> to vector<8x16x8xf32>
    %c0_23 = arith.constant 0 : index
    %c0_24 = arith.constant 0 : index
    %c0_25 = arith.constant 0 : index
    %c0_26 = arith.constant 0 : index
    %76 = vector.load %arg9[%c0_23, %c0_24, %c0_25, %c0_26] : memref<1x8x16x8xf32, #tpu.memory_space<vmem>>, vector<1x8x16x8xf32>
    %77 = vector.shape_cast %76 : vector<1x8x16x8xf32> to vector<8x16x8xf32>
    %78 = vector.shape_cast %75 : vector<8x16x8xf32> to vector<1x8x16x8xf32>
    tpu.vector_store %arg9[%c0_23, %c0_24, %c0_25, %c0_26], %78 {strides = array<i32>} : memref<1x8x16x8xf32, #tpu.memory_space<vmem>>, vector<1x8x16x8xf32>,
    return
  }
  func.func @transform_0(%arg0: i32, %arg1: i32) -> (i32, i32, i32) {
    %c0_i32 = arith.constant 0 : i32
    %c0_i32_0 = arith.constant 0 : i32
    %c0_i32_1 = arith.constant 0 : i32
    return %arg0, %c0_i32, %c0_i32_0 : i32, i32, i32
  }
  func.func @transform_1(%arg0: i32, %arg1: i32) -> (i32, i32, i32, i32) {
    %c0_i32 = arith.constant 0 : i32
    %c0_i32_0 = arith.constant 0 : i32
    %c0_i32_1 = arith.constant 0 : i32
    return %arg0, %arg1, %c0_i32, %c0_i32_0 : i32, i32, i32, i32
  }
  func.func @transform_2(%arg0: i32, %arg1: i32) -> (i32, i32, i32, i32) {
    %c0_i32 = arith.constant 0 : i32
    %c0_i32_0 = arith.constant 0 : i32
    %c0_i32_1 = arith.constant 0 : i32
    %c0_i32_2 = arith.constant 0 : i32
    return %arg0, %c0_i32, %c0_i32_0, %c0_i32_1 : i32, i32, i32, i32
  }
  func.func @transform_3(%arg0: i32, %arg1: i32) -> (i32, i32) {
    %c0_i32 = arith.constant 0 : i32
    %c0_i32_0 = arith.constant 0 : i32
    %c0_i32_1 = arith.constant 0 : i32
    return %c0_i32, %c0_i32_0 : i32, i32
  }
  func.func @transform_4(%arg0: i32, %arg1: i32) -> (i32, i32) {
    %c0_i32 = arith.constant 0 : i32
    %c0_i32_0 = arith.constant 0 : i32
    %c0_i32_1 = arith.constant 0 : i32
    return %c0_i32, %c0_i32_0 : i32, i32
  }
  func.func @transform_5(%arg0: i32, %arg1: i32) -> (i32, i32) {
    %c0_i32 = arith.constant 0 : i32
    %c0_i32_0 = arith.constant 0 : i32
    %c0_i32_1 = arith.constant 0 : i32
    return %c0_i32, %c0_i32_0 : i32, i32
  }
  func.func @transform_6(%arg0: i32, %arg1: i32) -> (i32, i32) {
    %c0_i32 = arith.constant 0 : i32
    %c0_i32_0 = arith.constant 0 : i32
    %c0_i32_1 = arith.constant 0 : i32
    return %c0_i32, %c0_i32_0 : i32, i32
  }
  func.func @transform_7(%arg0: i32, %arg1: i32) -> (i32, i32, i32, i32) {
    %c0_i32 = arith.constant 0 : i32
    %c0_i32_0 = arith.constant 0 : i32
    %c0_i32_1 = arith.constant 0 : i32
    return %arg0, %arg1, %c0_i32, %c0_i32_0 : i32, i32, i32, i32
  }
}

</mosaic_0001>

<llo_original>
// kernel: squeeze.2
$region0: #{squeeze.2}
  %s0 = inlined_call_operand.vmem [shape: f32[2,8], index: 0, kind: input, shape index: {}]
  %s1 = inlined_call_operand.vmem [shape: f32[2,2,4], index: 1, kind: output, shape index: {}]
  $region1: #{squeeze.2} parent=0
    #allocation0 [shape = 'u8[8192]{0}', space=vmem, size = 0x2000, scoped, tag = 'scoped mem for output reshape']
    #allocation1 [shape = 'u8[4096]{0}', space=vmem, size = 0x1000, scoped, tag = 'scoped mem for input reshape']
    %s3 = sshll.u32 1, 2
    %s4 = ssub.s32 %s3, 1
    %v5 = vld [vmem:[%s0] sm:%s4]
    %6 = vst [vmem:[#allocation1] sm:%s4] %v5
    %v7 = vld [vmem:[#allocation1] sm:$0x3]
    %vm8 = vcmask 31744
    %9 = vst.msk [vmem:[#allocation0] ss:$8 sm:$0x3] %vm8, %v7
    %v10 = vld [vmem:[#allocation1] sm:$0x3]
    %11 = vrot.lane.b32.xlu0 %v10, 124
    %v12 = vpop.permute.xlu0 %11
    %vm13 = vcmask 31744
    %s14 = scalar_lea.vmem [#allocation0], 1
    %15 = vst.msk [vmem:[%s14] ss:$8 sm:$0x3] %vm13, %v12
    %s17 = sshll.u32 1, 2
    %s18 = ssub.s32 %s17, 1
    %v20 = vld [vmem:[#allocation0] sm:%s18]
    %s21 = sshll.u32 1, 2
    %s22 = ssub.s32 %s21, 1
    %23 = vst [vmem:[%s1] sm:%s22] %v20
    %s24 = scalar_lea.vmem [#allocation0], 8
    %v25 = vld [vmem:[%s24] sm:%s18]
    %s26 = sshll.u32 1, 2
    %s27 = ssub.s32 %s26, 1
    %s28 = scalar_lea.vmem %s1, 2
    %29 = vst [vmem:[%s28] sm:%s27] %v25

// kernel: spade_forward.2
$region0: #{spade_forward.2}
  #allocation0 [shape = 'u32[]', space=smem, size = 0x4, offset = 0x4, fixed_abs, tag = 'smem constant byte address 0x4 - core index']
  #allocation1 [shape = 'u32[144,128]{1,0:T(1,128)}', space=vmem, size = 0x12000, scoped, tag = 'internal scratch']
  %s0 = inlined_call_operand.vmem [shape: f32[2,16,16,8], index: 0, kind: input, shape index: {}]
  %s1 = inlined_call_operand.vmem [shape: f32[2,2,2,8], index: 1, kind: output, shape index: {}]
  %s2 = sld [smem:[#allocation0]]
  $region37: #{spade_forward.2} parent=0
    _
  %s4 = ssub.s32 1, %s2
  %s5 = scalar_select 0, %s4, %s2
  loop: start=0, step=1, limit=6
  $region2: #{spade_forward.2} parent=0 // loop_pre_header
    _
  $region3: #{spade_forward.2} parent=0 // loop_header
    %s7 = sphi 0, %s11
    %p8 = scmp.ge.s32.totalorder %s7, 6
    %s14 = sphi 0, %s26
    %s15 = sphi 0, %s22
    %s16 = sphi 0, %s14
    %s17 = sphi 0, %s15
    %s18 = sphi 0, %s16
    %s19 = sphi 0, %s17
    %s31 = sphi 0, %s33
    %s34 = sphi 0, %s31
    %s35 = sphi 0, %s34
    %s51 = sphi 0, %s35
    %s59 = sphi 0, %s61
    %s62 = sphi 0, %s59
    %s63 = sphi 0, %s62
    %s79 = sphi 0, %s63
  $region4: #{spade_forward.2} parent=0 // loop_header_branch
    %10 = sbr.rel (%p8) target = $region8
  $region5: #{spade_forward.2} parent=0 // loop_body
    %s12 = ssub.s32 %s7, 1
    %s13 = ssub.s32 %s7, 2
    %s20 = sadd.s32 1, %s15
    %p21 = scmp.ge.s32.totalorder %s20, 2
    %s22 = scalar_select %p21, 0, %s20
    %s23 = sadd.s32 1, %s14
    %s24 = scalar_select %p21, %s23, %s14
    %p25 = scmp.ge.s32.totalorder %s24, 2
    %s26 = scalar_select %p25, 0, %s24
    %s27 = ssub.s32 %s14, %s26
    %s28 = ssub.s32 %s15, %s22
    %s29 = sor.u32 %s27, %s28
    %p30 = scmp.eq.s32.totalorder %s29, 0
    %s32 = sadd.s32 %s31, 1
    %s33 = scalar_select %p30, %s31, %s32
    %p36 = pneg %p30
    %p37 = scmp.eq.s32.totalorder %s7, 3
    %p38 = por %p36, %p37
    %p39 = scmp.ne.s32.totalorder %s31, %s34
    %p40 = scmp.eq.s32.totalorder %s7, 0
    %p41 = por %p39, %p40
    %p42 = scmp.ne.s32.totalorder %s31, %s34
    %p43 = scmp.eq.s32.totalorder %s12, 3
    %p44 = por %p42, %p43
    %p45 = scmp.ne.s32.totalorder %s34, %s35
    %p46 = scmp.eq.s32.totalorder %s12, 0
    %p47 = por %p45, %p46
    %p48 = scmp.ne.s32.totalorder %s34, %s35
    %p49 = scmp.eq.s32.totalorder %s13, 3
    %p50 = por %p48, %p49
    %p52 = scmp.ne.s32.totalorder %s35, %s51
    %p53 = scmp.eq.s32.totalorder %s13, 0
    %p54 = por %p52, %p53
    %s55 = ssub.s32 %s14, %s26
    %s56 = ssub.s32 %s15, %s22
    %s57 = sor.u32 %s55, %s56
    %p58 = scmp.eq.s32.totalorder %s57, 0
    %s60 = sadd.s32 %s59, 1
    %s61 = scalar_select %p58, %s59, %s60
    %p64 = pneg %p58
    %p65 = scmp.eq.s32.totalorder %s7, 3
    %p66 = por %p64, %p65
    %p67 = scmp.ne.s32.totalorder %s59, %s62
    %p68 = scmp.eq.s32.totalorder %s7, 0
    %p69 = por %p67, %p68
    %p70 = scmp.ne.s32.totalorder %s59, %s62
    %p71 = scmp.eq.s32.totalorder %s12, 3
    %p72 = por %p70, %p71
    %p73 = scmp.ne.s32.totalorder %s62, %s63
    %p74 = scmp.eq.s32.totalorder %s12, 0
    %p75 = por %p73, %p74
    %p76 = scmp.ne.s32.totalorder %s62, %s63
    %p77 = scmp.eq.s32.totalorder %s13, 3
    %p78 = por %p76, %p77
    %p80 = scmp.ne.s32.totalorder %s63, %s79
    %p81 = scmp.eq.s32.totalorder %s13, 0
    %p82 = por %p80, %p81
    %p83 = scmp.le.s32.totalorder 1, %s7
    %p84 = scmp.lt.s32.totalorder %s7, 5
    %p85 = pnand %p83, %p84
    %p86 = pneg %p85
    // Predicated region
    $region9: #{spade_forward.2} parent=5 // pred_check
      _
    $region10: #{spade_forward.2} parent=5 // pred_check_branch
      %88 = sbr.rel (%p85) target = $region12
    $region11: #{spade_forward.2} parent=5 // pred_region
      %s89 = ssub.s32 %s7, 1
    $region12: #{spade_forward.2} parent=5 // pred_fallthru
      _
    %p90 = scmp.lt.s32.totalorder %s7, 4
    // Predicated region
    $region13: #{spade_forward.2} parent=5 // pred_check
      %p91 = pneg %p90
    $region14: #{spade_forward.2} parent=5 // pred_check_branch
      %93 = sbr.rel (%p91) target = $region16
    $region15: #{spade_forward.2} parent=5 // pred_region
      // Predicated region
      $region17: #{spade_forward.2} parent=15 // pred_check
        %p94 = pneg %p41
      $region18: #{spade_forward.2} parent=15 // pred_check_branch
        %96 = sbr.rel (%p94) target = $region20
      $region19: #{spade_forward.2} parent=15 // pred_region
        %s97 = smul.u32 8, %s15
        %p98 = scmp.lt.s32.totalorder %s14, 1
        %s99 = scalar_select %p98, %s14, 1
        %p100 = scmp.lt.s32.totalorder %s97, 15
        %s101 = scalar_select %p100, %s97, 15
        %s102 = smul.addr %s101, 2
        %s103 = smul.addr %s99, 32
        %s104 = sadd.s32 %s102, %s103
        %s105 = smul.addr %s104, 8
        %s106 = scalar_lea.vmem %s0, %s105
        %s107 = smul.u32 8, %s15
      $region20: #{spade_forward.2} parent=15 // pred_fallthru
        _
    $region16: #{spade_forward.2} parent=5 // pred_fallthru
      _
    %p108 = scmp.le.s32.totalorder 1, %s7
    %p109 = scmp.lt.s32.totalorder %s7, 5
    %p110 = pnand %p108, %p109
    %p111 = pneg %p110
    // Predicated region
    $region21: #{spade_forward.2} parent=5 // pred_check
      _
    $region22: #{spade_forward.2} parent=5 // pred_check_branch
      %113 = sbr.rel (%p110) target = $region24
    $region23: #{spade_forward.2} parent=5 // pred_region
      %s114 = ssub.s32 %s7, 1
      %s115 = smul.u32 8, %s17
      %p116 = scmp.lt.s32.totalorder %s16, 1
      %s117 = scalar_select %p116, %s16, 1
      %p118 = scmp.lt.s32.totalorder %s115, 15
      %s119 = scalar_select %p118, %s115, 15
      %s120 = smul.addr %s119, 2
      %s121 = smul.addr %s117, 32
      %s122 = sadd.s32 %s120, %s121
      %s123 = smul.addr %s122, 8
      %s124 = scalar_lea.vmem %s0, %s123
      %p125 = pneg %p47
      %p126 = pneg %p44
      %p127 = pneg %p75
      %p128 = pneg %p72
      %p129 = scmp.lt.s32.totalorder %s16, 1
      %s130 = scalar_select %p129, %s16, 1
      %p131 = scmp.lt.s32.totalorder %s17, 1
      %s132 = scalar_select %p131, %s17, 1
      %s133 = smul.addr %s130, 2
      %s134 = sadd.s32 %s132, %s133
      %s135 = smul.addr %s134, 2
      %s136 = scalar_lea.vmem %s1, %s135
      %s137 = smul.u32 8, %s17
      %p138 = scmp.lt.s32.totalorder %s16, 1
      %s139 = scalar_select %p138, %s16, 1
      %p140 = scmp.lt.s32.totalorder %s137, 15
      %s141 = scalar_select %p140, %s137, 15
      %s142 = smul.addr %s141, 2
      %s143 = smul.addr %s139, 32
      %s144 = sadd.s32 %s142, %s143
      %s145 = smul.addr %s144, 8
      %s146 = scalar_lea.vmem %s0, %s145
      %s147 = smul.u32 8, %s17
      %p148 = scmp.lt.s32.totalorder %s16, 1
      %s149 = scalar_select %p148, %s16, 1
      %p150 = scmp.lt.s32.totalorder %s17, 1
      %s151 = scalar_select %p150, %s17, 1
      %s152 = smul.addr %s149, 2
      %s153 = sadd.s32 %s151, %s152
      %s154 = smul.addr %s153, 2
      %s155 = scalar_lea.vmem %s1, %s154
      %v156 = vld [vmem:[%s146] sm:$0xff]
      %v157 = vld [vmem:[%s146 + $0x8] sm:$0xff]
      %v158 = vld [vmem:[%s146 + $0x10] sm:$0xff]
      %v159 = vld [vmem:[%s146 + $0x18] sm:$0xff]
      %v160 = vld [vmem:[%s146 + $0x20] sm:$0xff]
      %v161 = vld [vmem:[%s146 + $0x28] sm:$0xff]
      %v162 = vld [vmem:[%s146 + $0x30] sm:$0xff]
      %v163 = vld [vmem:[%s146 + $0x38] sm:$0xff]
      %v164 = vld [vmem:[%s146 + $0x40] sm:$0xff]
      %v165 = vld [vmem:[%s146 + $0x48] sm:$0xff]
      %v166 = vld [vmem:[%s146 + $0x50] sm:$0xff]
      %v167 = vld [vmem:[%s146 + $0x58] sm:$0xff]
      %v168 = vld [vmem:[%s146 + $0x60] sm:$0xff]
      %v169 = vld [vmem:[%s146 + $0x68] sm:$0xff]
      %v170 = vld [vmem:[%s146 + $0x70] sm:$0xff]
      %v171 = vld [vmem:[%s146 + $0x78] sm:$0xff]
      %vm172 = vcmask 64512
      %v173 = vsel %vm172, %v156, 0.0
      %v174 = vsel %vm172, %v157, 0.0
      %v175 = vadd.f32 %v173, %v174
      %v176 = vsel %vm172, %v158, 0.0
      %v177 = vadd.f32 %v175, %v176
      %v178 = vsel %vm172, %v159, 0.0
      %v179 = vadd.f32 %v177, %v178
      %v180 = vsel %vm172, %v160, 0.0
      %v181 = vadd.f32 %v179, %v180
      %v182 = vsel %vm172, %v161, 0.0
      %v183 = vadd.f32 %v181, %v182
      %v184 = vsel %vm172, %v162, 0.0
      %v185 = vadd.f32 %v183, %v184
      %v186 = vsel %vm172, %v163, 0.0
      %v187 = vadd.f32 %v185, %v186
      %v188 = vsel %vm172, %v164, 0.0
      %v189 = vadd.f32 %v187, %v188
      %v190 = vsel %vm172, %v165, 0.0
      %v191 = vadd.f32 %v189, %v190
      %v192 = vsel %vm172, %v166, 0.0
      %v193 = vadd.f32 %v191, %v192
      %v194 = vsel %vm172, %v167, 0.0
      %v195 = vadd.f32 %v193, %v194
      %v196 = vsel %vm172, %v168, 0.0
      %v197 = vadd.f32 %v195, %v196
      %v198 = vsel %vm172, %v169, 0.0
      %v199 = vadd.f32 %v197, %v198
      %v200 = vsel %vm172, %v170, 0.0
      %v201 = vadd.f32 %v199, %v200
      %v202 = vsel %vm172, %v171, 0.0
      %v203 = vadd.f32 %v201, %v202
      %v204 = vrot.slane %v203, 4
      %v205 = vadd.f32 %v203, %v204
      %v206 = vrot.slane %v205, 2
      %v207 = vadd.f32 %v205, %v206
      %v208 = vrot.slane %v207, 1
      %v209 = vadd.f32 %v207, %v208
      %v210 = vmul.f32 %v156, %v156
      %v211 = vmul.f32 %v157, %v157
      %v212 = vmul.f32 %v158, %v158
      %v213 = vmul.f32 %v159, %v159
      %v214 = vmul.f32 %v160, %v160
      %v215 = vmul.f32 %v161, %v161
      %v216 = vmul.f32 %v162, %v162
      %v217 = vmul.f32 %v163, %v163
      %v218 = vmul.f32 %v164, %v164
      %v219 = vmul.f32 %v165, %v165
      %v220 = vmul.f32 %v166, %v166
      %v221 = vmul.f32 %v167, %v167
      %v222 = vmul.f32 %v168, %v168
      %v223 = vmul.f32 %v169, %v169
      %v224 = vmul.f32 %v170, %v170
      %v225 = vmul.f32 %v171, %v171
      %v226 = vsel %vm172, %v210, 0.0
      %v227 = vsel %vm172, %v211, 0.0
      %v228 = vadd.f32 %v226, %v227
      %v229 = vsel %vm172, %v212, 0.0
      %v230 = vadd.f32 %v228, %v229
      %v231 = vsel %vm172, %v213, 0.0
      %v232 = vadd.f32 %v230, %v231
      %v233 = vsel %vm172, %v214, 0.0
      %v234 = vadd.f32 %v232, %v233
      %v235 = vsel %vm172, %v215, 0.0
      %v236 = vadd.f32 %v234, %v235
      %v237 = vsel %vm172, %v216, 0.0
      %v238 = vadd.f32 %v236, %v237
      %v239 = vsel %vm172, %v217, 0.0
      %v240 = vadd.f32 %v238, %v239
      %v241 = vsel %vm172, %v218, 0.0
      %v242 = vadd.f32 %v240, %v241
      %v243 = vsel %vm172, %v219, 0.0
      %v244 = vadd.f32 %v242, %v243
      %v245 = vsel %vm172, %v220, 0.0
      %v246 = vadd.f32 %v244, %v245
      %v247 = vsel %vm172, %v221, 0.0
      %v248 = vadd.f32 %v246, %v247
      %v249 = vsel %vm172, %v222, 0.0
      %v250 = vadd.f32 %v248, %v249
      %v251 = vsel %vm172, %v223, 0.0
      %v252 = vadd.f32 %v250, %v251
      %v253 = vsel %vm172, %v224, 0.0
      %v254 = vadd.f32 %v252, %v253
      %v255 = vsel %vm172, %v225, 0.0
      %v256 = vadd.f32 %v254, %v255
      %v257 = vrot.slane %v256, 4
      %v258 = vadd.f32 %v256, %v257
      %v259 = vrot.slane %v258, 2
      %v260 = vadd.f32 %v258, %v259
      %v261 = vrot.slane %v260, 1
      %v262 = vadd.f32 %v260, %v261
      %vm263 = vcmask 1040384
      %v264 = vsel %vm263, %v209, %v262
      %vm265 = vcmask 58368
      %266 = vst.msk [vmem:[%s155] sm:$0x3] %vm265, %v264
      %p267 = scmp.lt.s32.totalorder %s16, 1
      %s268 = scalar_select %p267, %s16, 1
      %p269 = scmp.lt.s32.totalorder %s17, 1
      %s270 = scalar_select %p269, %s17, 1
      %s271 = smul.addr %s268, 2
      %s272 = sadd.s32 %s270, %s271
      %s273 = smul.addr %s272, 2
      %s274 = scalar_lea.vmem %s1, %s273
      // Predicated region
      $region25: #{spade_forward.2} parent=23 // pred_check
        %p275 = pneg %p72
      $region26: #{spade_forward.2} parent=23 // pred_check_branch
        %277 = sbr.rel (%p275) target = $region28
      $region27: #{spade_forward.2} parent=23 // pred_region
        _
      $region28: #{spade_forward.2} parent=23 // pred_fallthru
        _
    $region24: #{spade_forward.2} parent=5 // pred_fallthru
      _
    %p278 = scmp.le.s32.totalorder 2, %s7
    // Predicated region
    $region29: #{spade_forward.2} parent=5 // pred_check
      %p279 = pneg %p278
    $region30: #{spade_forward.2} parent=5 // pred_check_branch
      %281 = sbr.rel (%p279) target = $region32
    $region31: #{spade_forward.2} parent=5 // pred_region
      %s282 = ssub.s32 %s7, 2
      // Predicated region
      $region33: #{spade_forward.2} parent=31 // pred_check
        %p283 = pneg %p78
      $region34: #{spade_forward.2} parent=31 // pred_check_branch
        %285 = sbr.rel (%p283) target = $region36
      $region35: #{spade_forward.2} parent=31 // pred_region
        %p286 = scmp.lt.s32.totalorder %s18, 1
        %s287 = scalar_select %p286, %s18, 1
        %p288 = scmp.lt.s32.totalorder %s19, 1
        %s289 = scalar_select %p288, %s19, 1
        %s290 = smul.addr %s287, 2
        %s291 = sadd.s32 %s289, %s290
        %s292 = smul.addr %s291, 2
        %s293 = scalar_lea.vmem %s1, %s292
      $region36: #{spade_forward.2} parent=31 // pred_fallthru
        _
    $region32: #{spade_forward.2} parent=5 // pred_fallthru
      _
  $region6: #{spade_forward.2} parent=0 // loop_footer
    %s11 = sadd.s32 1, %s7
  $region7: #{spade_forward.2} parent=0 // loop_footer_branch
    %6 = sbr.rel target = $region3
  $region8: #{spade_forward.2} parent=0 // loop_exit
    _

// kernel: spade_forward.3
$region0: #{spade_forward.3}
  #allocation0 [shape = 'u32[]', space=smem, size = 0x4, offset = 0x4, fixed_abs, tag = 'smem constant byte address 0x4 - core index']
  #allocation1 [shape = 'u32[144,128]{1,0:T(1,128)}', space=vmem, size = 0x12000, scoped, tag = 'internal scratch']
  %s0 = inlined_call_operand.vmem [shape: f32[2,2,8], index: 0, kind: input, shape index: {}]
  %s1 = inlined_call_operand.vmem [shape: f32[2,16,16,8], index: 1, kind: input, shape index: {}]
  %s2 = inlined_call_operand.vmem [shape: f32[2,20,18,3], index: 2, kind: input, shape index: {}]
  %s3 = inlined_call_operand.vmem [shape: bf16[27,16], index: 3, kind: input, shape index: {}]
  %s4 = inlined_call_operand.vmem [shape: f32[1,16], index: 4, kind: input, shape index: {}]
  %s5 = inlined_call_operand.vmem [shape: bf16[144,16], index: 5, kind: input, shape index: {}]
  %s6 = inlined_call_operand.vmem [shape: f32[1,16], index: 6, kind: input, shape index: {}]
  %s7 = inlined_call_operand.vmem [shape: f32[2,16,16,8], index: 7, kind: output, shape index: {}]
  %s8 = sld [smem:[#allocation0]]
  $region61: #{spade_forward.3} parent=0
    _
  %s10 = ssub.s32 1, %s8
  %s11 = scalar_select 0, %s10, %s8
  loop: start=0, step=1, limit=6
  $region2: #{spade_forward.3} parent=0 // loop_pre_header
    _
  $region3: #{spade_forward.3} parent=0 // loop_header
    %s13 = sphi 0, %s17
    %p14 = scmp.ge.s32.totalorder %s13, 6
    %s20 = sphi 0, %s32
    %s21 = sphi 0, %s28
    %s22 = sphi 0, %s20
    %s23 = sphi 0, %s21
    %s24 = sphi 0, %s22
    %s25 = sphi 0, %s23
    %s35 = sphi 0, %s37
    %s38 = sphi 0, %s35
    %s39 = sphi 0, %s38
    %s55 = sphi 0, %s39
    %s63 = sphi 0, %s65
    %s66 = sphi 0, %s63
    %s67 = sphi 0, %s66
    %s83 = sphi 0, %s67
    %s89 = sphi 0, %s91
    %s92 = sphi 0, %s89
    %s93 = sphi 0, %s92
    %s109 = sphi 0, %s93
    %s113 = sphi 0, %s113
    %s115 = sphi 0, %s113
    %s116 = sphi 0, %s115
    %s130 = sphi 0, %s116
    %s134 = sphi 0, %s134
    %s136 = sphi 0, %s134
    %s137 = sphi 0, %s136
    %s151 = sphi 0, %s137
    %s155 = sphi 0, %s155
    %s157 = sphi 0, %s155
    %s158 = sphi 0, %s157
    %s172 = sphi 0, %s158
    %s176 = sphi 0, %s176
    %s178 = sphi 0, %s176
    %s179 = sphi 0, %s178
    %s193 = sphi 0, %s179
    %s201 = sphi 0, %s203
    %s204 = sphi 0, %s201
    %s205 = sphi 0, %s204
    %s221 = sphi 0, %s205
  $region4: #{spade_forward.3} parent=0 // loop_header_branch
    %16 = sbr.rel (%p14) target = $region8
  $region5: #{spade_forward.3} parent=0 // loop_body
    %s18 = ssub.s32 %s13, 1
    %s19 = ssub.s32 %s13, 2
    %s26 = sadd.s32 1, %s21
    %p27 = scmp.ge.s32.totalorder %s26, 2
    %s28 = scalar_select %p27, 0, %s26
    %s29 = sadd.s32 1, %s20
    %s30 = scalar_select %p27, %s29, %s20
    %p31 = scmp.ge.s32.totalorder %s30, 2
    %s32 = scalar_select %p31, 0, %s30
    %s33 = ssub.s32 %s20, %s32
    %p34 = scmp.eq.s32.totalorder %s33, 0
    %s36 = sadd.s32 %s35, 1
    %s37 = scalar_select %p34, %s35, %s36
    %p40 = pneg %p34
    %p41 = scmp.eq.s32.totalorder %s13, 3
    %p42 = por %p40, %p41
    %p43 = scmp.ne.s32.totalorder %s35, %s38
    %p44 = scmp.eq.s32.totalorder %s13, 0
    %p45 = por %p43, %p44
    %p46 = scmp.ne.s32.totalorder %s35, %s38
    %p47 = scmp.eq.s32.totalorder %s18, 3
    %p48 = por %p46, %p47
    %p49 = scmp.ne.s32.totalorder %s38, %s39
    %p50 = scmp.eq.s32.totalorder %s18, 0
    %p51 = por %p49, %p50
    %p52 = scmp.ne.s32.totalorder %s38, %s39
    %p53 = scmp.eq.s32.totalorder %s19, 3
    %p54 = por %p52, %p53
    %p56 = scmp.ne.s32.totalorder %s39, %s55
    %p57 = scmp.eq.s32.totalorder %s19, 0
    %p58 = por %p56, %p57
    %s59 = ssub.s32 %s20, %s32
    %s60 = ssub.s32 %s21, %s28
    %s61 = sor.u32 %s59, %s60
    %p62 = scmp.eq.s32.totalorder %s61, 0
    %s64 = sadd.s32 %s63, 1
    %s65 = scalar_select %p62, %s63, %s64
    %p68 = pneg %p62
    %p69 = scmp.eq.s32.totalorder %s13, 3
    %p70 = por %p68, %p69
    %p71 = scmp.ne.s32.totalorder %s63, %s66
    %p72 = scmp.eq.s32.totalorder %s13, 0
    %p73 = por %p71, %p72
    %p74 = scmp.ne.s32.totalorder %s63, %s66
    %p75 = scmp.eq.s32.totalorder %s18, 3
    %p76 = por %p74, %p75
    %p77 = scmp.ne.s32.totalorder %s66, %s67
    %p78 = scmp.eq.s32.totalorder %s18, 0
    %p79 = por %p77, %p78
    %p80 = scmp.ne.s32.totalorder %s66, %s67
    %p81 = scmp.eq.s32.totalorder %s19, 3
    %p82 = por %p80, %p81
    %p84 = scmp.ne.s32.totalorder %s67, %s83
    %p85 = scmp.eq.s32.totalorder %s19, 0
    %p86 = por %p84, %p85
    %s87 = ssub.s32 %s20, %s32
    %p88 = scmp.eq.s32.totalorder %s87, 0
    %s90 = sadd.s32 %s89, 1
    %s91 = scalar_select %p88, %s89, %s90
    %p94 = pneg %p88
    %p95 = scmp.eq.s32.totalorder %s13, 3
    %p96 = por %p94, %p95
    %p97 = scmp.ne.s32.totalorder %s89, %s92
    %p98 = scmp.eq.s32.totalorder %s13, 0
    %p99 = por %p97, %p98
    %p100 = scmp.ne.s32.totalorder %s89, %s92
    %p101 = scmp.eq.s32.totalorder %s18, 3
    %p102 = por %p100, %p101
    %p103 = scmp.ne.s32.totalorder %s92, %s93
    %p104 = scmp.eq.s32.totalorder %s18, 0
    %p105 = por %p103, %p104
    %p106 = scmp.ne.s32.totalorder %s92, %s93
    %p107 = scmp.eq.s32.totalorder %s19, 3
    %p108 = por %p106, %p107
    %p110 = scmp.ne.s32.totalorder %s93, %s109
    %p111 = scmp.eq.s32.totalorder %s19, 0
    %p112 = por %p110, %p111
    %s114 = sadd.s32 %s113, 1
    %p117 = scmp.eq.s32.totalorder %s13, 3
    %p118 = scmp.ne.s32.totalorder %s113, %s115
    %p119 = scmp.eq.s32.totalorder %s13, 0
    %p120 = por %p118, %p119
    %p121 = scmp.ne.s32.totalorder %s113, %s115
    %p122 = scmp.eq.s32.totalorder %s18, 3
    %p123 = por %p121, %p122
    %p124 = scmp.ne.s32.totalorder %s115, %s116
    %p125 = scmp.eq.s32.totalorder %s18, 0
    %p126 = por %p124, %p125
    %p127 = scmp.ne.s32.totalorder %s115, %s116
    %p128 = scmp.eq.s32.totalorder %s19, 3
    %p129 = por %p127, %p128
    %p131 = scmp.ne.s32.totalorder %s116, %s130
    %p132 = scmp.eq.s32.totalorder %s19, 0
    %p133 = por %p131, %p132
    %s135 = sadd.s32 %s134, 1
    %p138 = scmp.eq.s32.totalorder %s13, 3
    %p139 = scmp.ne.s32.totalorder %s134, %s136
    %p140 = scmp.eq.s32.totalorder %s13, 0
    %p141 = por %p139, %p140
    %p142 = scmp.ne.s32.totalorder %s134, %s136
    %p143 = scmp.eq.s32.totalorder %s18, 3
    %p144 = por %p142, %p143
    %p145 = scmp.ne.s32.totalorder %s136, %s137
    %p146 = scmp.eq.s32.totalorder %s18, 0
    %p147 = por %p145, %p146
    %p148 = scmp.ne.s32.totalorder %s136, %s137
    %p149 = scmp.eq.s32.totalorder %s19, 3
    %p150 = por %p148, %p149
    %p152 = scmp.ne.s32.totalorder %s137, %s151
    %p153 = scmp.eq.s32.totalorder %s19, 0
    %p154 = por %p152, %p153
    %s156 = sadd.s32 %s155, 1
    %p159 = scmp.eq.s32.totalorder %s13, 3
    %p160 = scmp.ne.s32.totalorder %s155, %s157
    %p161 = scmp.eq.s32.totalorder %s13, 0
    %p162 = por %p160, %p161
    %p163 = scmp.ne.s32.totalorder %s155, %s157
    %p164 = scmp.eq.s32.totalorder %s18, 3
    %p165 = por %p163, %p164
    %p166 = scmp.ne.s32.totalorder %s157, %s158
    %p167 = scmp.eq.s32.totalorder %s18, 0
    %p168 = por %p166, %p167
    %p169 = scmp.ne.s32.totalorder %s157, %s158
    %p170 = scmp.eq.s32.totalorder %s19, 3
    %p171 = por %p169, %p170
    %p173 = scmp.ne.s32.totalorder %s158, %s172
    %p174 = scmp.eq.s32.totalorder %s19, 0
    %p175 = por %p173, %p174
    %s177 = sadd.s32 %s176, 1
    %p180 = scmp.eq.s32.totalorder %s13, 3
    %p181 = scmp.ne.s32.totalorder %s176, %s178
    %p182 = scmp.eq.s32.totalorder %s13, 0
    %p183 = por %p181, %p182
    %p184 = scmp.ne.s32.totalorder %s176, %s178
    %p185 = scmp.eq.s32.totalorder %s18, 3
    %p186 = por %p184, %p185
    %p187 = scmp.ne.s32.totalorder %s178, %s179
    %p188 = scmp.eq.s32.totalorder %s18, 0
    %p189 = por %p187, %p188
    %p190 = scmp.ne.s32.totalorder %s178, %s179
    %p191 = scmp.eq.s32.totalorder %s19, 3
    %p192 = por %p190, %p191
    %p194 = scmp.ne.s32.totalorder %s179, %s193
    %p195 = scmp.eq.s32.totalorder %s19, 0
    %p196 = por %p194, %p195
    %s197 = ssub.s32 %s20, %s32
    %s198 = ssub.s32 %s21, %s28
    %s199 = sor.u32 %s197, %s198
    %p200 = scmp.eq.s32.totalorder %s199, 0
    %s202 = sadd.s32 %s201, 1
    %s203 = scalar_select %p200, %s201, %s202
    %p206 = pneg %p200
    %p207 = scmp.eq.s32.totalorder %s13, 3
    %p208 = por %p206, %p207
    %p209 = scmp.ne.s32.totalorder %s201, %s204
    %p210 = scmp.eq.s32.totalorder %s13, 0
    %p211 = por %p209, %p210
    %p212 = scmp.ne.s32.totalorder %s201, %s204
    %p213 = scmp.eq.s32.totalorder %s18, 3
    %p214 = por %p212, %p213
    %p215 = scmp.ne.s32.totalorder %s204, %s205
    %p216 = scmp.eq.s32.totalorder %s18, 0
    %p217 = por %p215, %p216
    %p218 = scmp.ne.s32.totalorder %s204, %s205
    %p219 = scmp.eq.s32.totalorder %s19, 3
    %p220 = por %p218, %p219
    %p222 = scmp.ne.s32.totalorder %s205, %s221
    %p223 = scmp.eq.s32.totalorder %s19, 0
    %p224 = por %p222, %p223
    %p225 = scmp.le.s32.totalorder 1, %s13
    %p226 = scmp.lt.s32.totalorder %s13, 5
    %p227 = pnand %p225, %p226
    %p228 = pneg %p227
    // Predicated region
    $region9: #{spade_forward.3} parent=5 // pred_check
      _
    $region10: #{spade_forward.3} parent=5 // pred_check_branch
      %230 = sbr.rel (%p227) target = $region12
    $region11: #{spade_forward.3} parent=5 // pred_region
      %s231 = ssub.s32 %s13, 1
      // Predicated region
      $region13: #{spade_forward.3} parent=11 // pred_check
        %p232 = pneg %p126
      $region14: #{spade_forward.3} parent=11 // pred_check_branch
        %234 = sbr.rel (%p232) target = $region16
      $region15: #{spade_forward.3} parent=11 // pred_region
        _
      $region16: #{spade_forward.3} parent=11 // pred_fallthru
        _
      // Predicated region
      $region17: #{spade_forward.3} parent=11 // pred_check
        %p235 = pneg %p147
      $region18: #{spade_forward.3} parent=11 // pred_check_branch
        %237 = sbr.rel (%p235) target = $region20
      $region19: #{spade_forward.3} parent=11 // pred_region
        _
      $region20: #{spade_forward.3} parent=11 // pred_fallthru
        _
      // Predicated region
      $region21: #{spade_forward.3} parent=11 // pred_check
        %p238 = pneg %p168
      $region22: #{spade_forward.3} parent=11 // pred_check_branch
        %240 = sbr.rel (%p238) target = $region24
      $region23: #{spade_forward.3} parent=11 // pred_region
        _
      $region24: #{spade_forward.3} parent=11 // pred_fallthru
        _
      // Predicated region
      $region25: #{spade_forward.3} parent=11 // pred_check
        %p241 = pneg %p189
      $region26: #{spade_forward.3} parent=11 // pred_check_branch
        %243 = sbr.rel (%p241) target = $region28
      $region27: #{spade_forward.3} parent=11 // pred_region
        _
      $region28: #{spade_forward.3} parent=11 // pred_fallthru
        _
    $region12: #{spade_forward.3} parent=5 // pred_fallthru
      _
    %p244 = scmp.lt.s32.totalorder %s13, 4
    // Predicated region
    $region29: #{spade_forward.3} parent=5 // pred_check
      %p245 = pneg %p244
    $region30: #{spade_forward.3} parent=5 // pred_check_branch
      %247 = sbr.rel (%p245) target = $region32
    $region31: #{spade_forward.3} parent=5 // pred_region
      // Predicated region
      $region33: #{spade_forward.3} parent=31 // pred_check
        %p248 = pneg %p45
      $region34: #{spade_forward.3} parent=31 // pred_check_branch
        %250 = sbr.rel (%p248) target = $region36
      $region35: #{spade_forward.3} parent=31 // pred_region
        %p251 = scmp.lt.s32.totalorder %s20, 1
        %s252 = scalar_select %p251, %s20, 1
        %s253 = smul.addr %s252, 2
        %s254 = scalar_lea.vmem %s0, %s253
      $region36: #{spade_forward.3} parent=31 // pred_fallthru
        _
      // Predicated region
      $region37: #{spade_forward.3} parent=31 // pred_check
        %p255 = pneg %p73
      $region38: #{spade_forward.3} parent=31 // pred_check_branch
        %257 = sbr.rel (%p255) target = $region40
      $region39: #{spade_forward.3} parent=31 // pred_region
        %s258 = smul.u32 8, %s21
        %p259 = scmp.lt.s32.totalorder %s20, 1
        %s260 = scalar_select %p259, %s20, 1
        %p261 = scmp.lt.s32.totalorder %s258, 15
        %s262 = scalar_select %p261, %s258, 15
        %s263 = smul.addr %s262, 2
        %s264 = smul.addr %s260, 32
        %s265 = sadd.s32 %s263, %s264
        %s266 = smul.addr %s265, 8
        %s267 = scalar_lea.vmem %s1, %s266
        %s268 = smul.u32 8, %s21
      $region40: #{spade_forward.3} parent=31 // pred_fallthru
        _
      // Predicated region
      $region41: #{spade_forward.3} parent=31 // pred_check
        %p269 = pneg %p99
      $region42: #{spade_forward.3} parent=31 // pred_check_branch
        %271 = sbr.rel (%p269) target = $region44
      $region43: #{spade_forward.3} parent=31 // pred_region
        %p272 = scmp.lt.s32.totalorder %s20, 1
        %s273 = scalar_select %p272, %s20, 1
        %s274 = smul.addr %s273, 60
        %s275 = smul.addr %s274, 8
        %s276 = scalar_lea.vmem %s2, %s275
      $region44: #{spade_forward.3} parent=31 // pred_fallthru
        _
    $region32: #{spade_forward.3} parent=5 // pred_fallthru
      _
    %p277 = scmp.le.s32.totalorder 1, %s13
    %p278 = scmp.lt.s32.totalorder %s13, 5
    %p279 = pnand %p277, %p278
    %p280 = pneg %p279
    // Predicated region
    $region45: #{spade_forward.3} parent=5 // pred_check
      _
    $region46: #{spade_forward.3} parent=5 // pred_check_branch
      %282 = sbr.rel (%p279) target = $region48
    $region47: #{spade_forward.3} parent=5 // pred_region
      %s283 = ssub.s32 %s13, 1
      %p284 = scmp.lt.s32.totalorder %s22, 1
      %s285 = scalar_select %p284, %s22, 1
      %s286 = smul.addr %s285, 2
      %s287 = scalar_lea.vmem %s0, %s286
      %p288 = pneg %p51
      %p289 = pneg %p48
      %s290 = smul.u32 8, %s23
      %p291 = scmp.lt.s32.totalorder %s22, 1
      %s292 = scalar_select %p291, %s22, 1
      %p293 = scmp.lt.s32.totalorder %s290, 15
      %s294 = scalar_select %p293, %s290, 15
      %s295 = smul.addr %s294, 2
      %s296 = smul.addr %s292, 32
      %s297 = sadd.s32 %s295, %s296
      %s298 = smul.addr %s297, 8
      %s299 = scalar_lea.vmem %s1, %s298
      %p300 = pneg %p79
      %p301 = pneg %p76
      %p302 = scmp.lt.s32.totalorder %s22, 1
      %s303 = scalar_select %p302, %s22, 1
      %s304 = smul.addr %s303, 60
      %s305 = smul.addr %s304, 8
      %s306 = scalar_lea.vmem %s2, %s305
      %p307 = pneg %p105
      %p308 = pneg %p102
      %p309 = pneg %p126
      %p310 = pneg %p123
      %p311 = pneg %p147
      %p312 = pneg %p144
      %p313 = pneg %p168
      %p314 = pneg %p165
      %p315 = pneg %p189
      %p316 = pneg %p186
      %p317 = pneg %p217
      %p318 = pneg %p214
      %s319 = smul.u32 8, %s23
      %p320 = scmp.lt.s32.totalorder %s22, 1
      %s321 = scalar_select %p320, %s22, 1
      %p322 = scmp.lt.s32.totalorder %s319, 15
      %s323 = scalar_select %p322, %s319, 15
      %s324 = smul.addr %s323, 2
      %s325 = smul.addr %s321, 32
      %s326 = sadd.s32 %s324, %s325
      %s327 = smul.addr %s326, 8
      %s328 = scalar_lea.vmem %s7, %s327
      %p329 = scmp.lt.s32.totalorder %s22, 1
      %s330 = scalar_select %p329, %s22, 1
      %s331 = smul.addr %s330, 2
      %s332 = scalar_lea.vmem %s0, %s331
      %s333 = smul.u32 8, %s23
      %p334 = scmp.lt.s32.totalorder %s22, 1
      %s335 = scalar_select %p334, %s22, 1
      %p336 = scmp.lt.s32.totalorder %s333, 15
      %s337 = scalar_select %p336, %s333, 15
      %s338 = smul.addr %s337, 2
      %s339 = smul.addr %s335, 32
      %s340 = sadd.s32 %s338, %s339
      %s341 = smul.addr %s340, 8
      %s342 = scalar_lea.vmem %s1, %s341
      %s343 = smul.u32 8, %s23
      %p344 = scmp.lt.s32.totalorder %s22, 1
      %s345 = scalar_select %p344, %s22, 1
      %s346 = smul.addr %s345, 60
      %s347 = smul.addr %s346, 8
      %s348 = scalar_lea.vmem %s2, %s347
      %s349 = smul.u32 8, %s23
      %p350 = scmp.lt.s32.totalorder %s22, 1
      %s351 = scalar_select %p350, %s22, 1
      %p352 = scmp.lt.s32.totalorder %s349, 15
      %s353 = scalar_select %p352, %s349, 15
      %s354 = smul.addr %s353, 2
      %s355 = smul.addr %s351, 32
      %s356 = sadd.s32 %s354, %s355
      %s357 = smul.addr %s356, 8
      %s358 = scalar_lea.vmem %s7, %s357
      %s359 = smul.u32 8, %s23
      %s361 = smul.u32 %s23, 8
      %s362 = smul.u32 %s361, 24
      %s363 = scalar_lea.vmem %s348, %s362
      %v364 = vld [vmem:[%s363] sm:$0xff]
      %v365 = vld [vmem:[%s363 + $0x8] sm:$0xff]
      %v366 = vld [vmem:[%s363 + $0x10] sm:$0x3]
      %v367 = vld [vmem:[%s363 + $0x18] sm:$0xff]
      %v368 = vld [vmem:[%s363 + $0x20] sm:$0xff]
      %v369 = vld [vmem:[%s363 + $0x28] sm:$0x3]
      %v370 = vld [vmem:[%s363 + $0x30] sm:$0xff]
      %v371 = vld [vmem:[%s363 + $0x38] sm:$0xff]
      %v372 = vld [vmem:[%s363 + $0x40] sm:$0x3]
      %v373 = vld [vmem:[%s363 + $0x48] sm:$0xff]
      %v374 = vld [vmem:[%s363 + $0x50] sm:$0xff]
      %v375 = vld [vmem:[%s363 + $0x58] sm:$0x3]
      %v376 = vld [vmem:[%s363 + $0x60] sm:$0xff]
      %v377 = vld [vmem:[%s363 + $0x68] sm:$0xff]
      %v378 = vld [vmem:[%s363 + $0x70] sm:$0x3]
      %v379 = vld [vmem:[%s363 + $0x78] sm:$0xff]
      %v380 = vld [vmem:[%s363 + $0x80] sm:$0xff]
      %v381 = vld [vmem:[%s363 + $0x88] sm:$0x3]
      %v382 = vld [vmem:[%s363 + $0x90] sm:$0xff]
      %v383 = vld [vmem:[%s363 + $0x98] sm:$0xff]
      %v384 = vld [vmem:[%s363 + $0xa0] sm:$0x3]
      %v385 = vld [vmem:[%s363 + $0xa8] sm:$0xff]
      %v386 = vld [vmem:[%s363 + $0xb0] sm:$0xff]
      %v387 = vld [vmem:[%s363 + $0xb8] sm:$0x3]
      %v388 = vld [vmem:[%s363 + $0xc0] sm:$0xff]
      %v389 = vld [vmem:[%s363 + $0xc8] sm:$0xff]
      %v390 = vld [vmem:[%s363 + $0xd0] sm:$0x3]
      %v391 = vld [vmem:[%s363 + $0xd8] sm:$0xff]
      %v392 = vld [vmem:[%s363 + $0xe0] sm:$0xff]
      %v393 = vld [vmem:[%s363 + $0xe8] sm:$0x3]
      %v394 = vld [vmem:[%s363 + $0xf0] sm:$0xff]
      %v395 = vld [vmem:[%s363 + $0xf8] sm:$0xff]
      %v396 = vld [vmem:[%s363 + $0x100] sm:$0x3]
      %v397 = vld [vmem:[%s363 + $0x108] sm:$0xff]
      %v398 = vld [vmem:[%s363 + $0x110] sm:$0xff]
      %v399 = vld [vmem:[%s363 + $0x118] sm:$0x3]
      %vm436 = vcmask 1046528
      %v437 = vrot.slane %v364, 1
      %v438 = vrot.slane %v365, 1
      %v439 = vsel %vm436, %v437, %v438
      %v440 = vrot.slane %v366, 1
      %v441 = vsel %vm436, %v438, %v440
      %v442 = vrot.slane %v367, 1
      %v443 = vrot.slane %v368, 1
      %v444 = vsel %vm436, %v442, %v443
      %v445 = vrot.slane %v369, 1
      %v446 = vsel %vm436, %v443, %v445
      %v447 = vrot.slane %v370, 1
      %v448 = vrot.slane %v371, 1
      %v449 = vsel %vm436, %v447, %v448
      %v450 = vrot.slane %v372, 1
      %v451 = vsel %vm436, %v448, %v450
      %v452 = vrot.slane %v373, 1
      %v453 = vrot.slane %v374, 1
      %v454 = vsel %vm436, %v452, %v453
      %v455 = vrot.slane %v375, 1
      %v456 = vsel %vm436, %v453, %v455
      %v457 = vrot.slane %v376, 1
      %v458 = vrot.slane %v377, 1
      %v459 = vsel %vm436, %v457, %v458
      %v460 = vrot.slane %v378, 1
      %v461 = vsel %vm436, %v458, %v460
      %v462 = vrot.slane %v379, 1
      %v463 = vrot.slane %v380, 1
      %v464 = vsel %vm436, %v462, %v463
      %v465 = vrot.slane %v381, 1
      %v466 = vsel %vm436, %v463, %v465
      %v467 = vrot.slane %v382, 1
      %v468 = vrot.slane %v383, 1
      %v469 = vsel %vm436, %v467, %v468
      %v470 = vrot.slane %v384, 1
      %v471 = vsel %vm436, %v468, %v470
      %v472 = vrot.slane %v385, 1
      %v473 = vrot.slane %v386, 1
      %v474 = vsel %vm436, %v472, %v473
      %v475 = vrot.slane %v387, 1
      %v476 = vsel %vm436, %v473, %v475
      %v477 = vrot.slane %v388, 1
      %v478 = vrot.slane %v389, 1
      %v479 = vsel %vm436, %v477, %v478
      %v480 = vrot.slane %v390, 1
      %v481 = vsel %vm436, %v478, %v480
      %v482 = vrot.slane %v391, 1
      %v483 = vrot.slane %v392, 1
      %v484 = vsel %vm436, %v482, %v483
      %v485 = vrot.slane %v393, 1
      %v486 = vsel %vm436, %v483, %v485
      %v487 = vrot.slane %v394, 1
      %v488 = vrot.slane %v395, 1
      %v489 = vsel %vm436, %v487, %v488
      %v490 = vrot.slane %v396, 1
      %v491 = vsel %vm436, %v488, %v490
      %v492 = vrot.slane %v397, 1
      %v493 = vrot.slane %v398, 1
      %v494 = vsel %vm436, %v492, %v493
      %v495 = vrot.slane %v399, 1
      %v496 = vsel %vm436, %v493, %v495
      %497 = vrot.lane.b32.xlu0 %v439, 3
      %v498 = vpop.permute.xlu0 %497
      %499 = vrot.lane.b32.xlu0 %v441, 3
      %v500 = vpop.permute.xlu0 %499
      %501 = vrot.lane.b32.xlu0 %v444, 3
      %v502 = vpop.permute.xlu0 %501
      %503 = vrot.lane.b32.xlu0 %v446, 3
      %v504 = vpop.permute.xlu0 %503
      %505 = vrot.lane.b32.xlu0 %v449, 3
      %v506 = vpop.permute.xlu0 %505
      %507 = vrot.lane.b32.xlu0 %v451, 3
      %v508 = vpop.permute.xlu0 %507
      %509 = vrot.lane.b32.xlu0 %v454, 3
      %v510 = vpop.permute.xlu0 %509
      %511 = vrot.lane.b32.xlu0 %v456, 3
      %v512 = vpop.permute.xlu0 %511
      %513 = vrot.lane.b32.xlu0 %v459, 3
      %v514 = vpop.permute.xlu0 %513
      %515 = vrot.lane.b32.xlu0 %v461, 3
      %v516 = vpop.permute.xlu0 %515
      %517 = vrot.lane.b32.xlu0 %v464, 3
      %v518 = vpop.permute.xlu0 %517
      %519 = vrot.lane.b32.xlu0 %v466, 3
      %v520 = vpop.permute.xlu0 %519
      %521 = vrot.lane.b32.xlu0 %v469, 3
      %v522 = vpop.permute.xlu0 %521
      %523 = vrot.lane.b32.xlu0 %v471, 3
      %v524 = vpop.permute.xlu0 %523
      %525 = vrot.lane.b32.xlu0 %v474, 3
      %v526 = vpop.permute.xlu0 %525
      %527 = vrot.lane.b32.xlu0 %v476, 3
      %v528 = vpop.permute.xlu0 %527
      %529 = vrot.lane.b32.xlu0 %v479, 3
      %v530 = vpop.permute.xlu0 %529
      %531 = vrot.lane.b32.xlu0 %v481, 3
      %v532 = vpop.permute.xlu0 %531
      %533 = vrot.lane.b32.xlu0 %v484, 3
      %v534 = vpop.permute.xlu0 %533
      %535 = vrot.lane.b32.xlu0 %v486, 3
      %v536 = vpop.permute.xlu0 %535
      %537 = vrot.lane.b32.xlu0 %v489, 3
      %v538 = vpop.permute.xlu0 %537
      %539 = vrot.lane.b32.xlu0 %v491, 3
      %v540 = vpop.permute.xlu0 %539
      %541 = vrot.lane.b32.xlu0 %v494, 3
      %v542 = vpop.permute.xlu0 %541
      %543 = vrot.lane.b32.xlu0 %v496, 3
      %v544 = vpop.permute.xlu0 %543
      %vm569 = vcmask 1045504
      %v570 = vrot.slane %v364, 2
      %v571 = vrot.slane %v365, 2
      %v572 = vsel %vm569, %v570, %v571
      %v573 = vrot.slane %v366, 2
      %v574 = vsel %vm569, %v571, %v573
      %v575 = vrot.slane %v367, 2
      %v576 = vrot.slane %v368, 2
      %v577 = vsel %vm569, %v575, %v576
      %v578 = vrot.slane %v369, 2
      %v579 = vsel %vm569, %v576, %v578
      %v580 = vrot.slane %v370, 2
      %v581 = vrot.slane %v371, 2
      %v582 = vsel %vm569, %v580, %v581
      %v583 = vrot.slane %v372, 2
      %v584 = vsel %vm569, %v581, %v583
      %v585 = vrot.slane %v373, 2
      %v586 = vrot.slane %v374, 2
      %v587 = vsel %vm569, %v585, %v586
      %v588 = vrot.slane %v375, 2
      %v589 = vsel %vm569, %v586, %v588
      %v590 = vrot.slane %v376, 2
      %v591 = vrot.slane %v377, 2
      %v592 = vsel %vm569, %v590, %v591
      %v593 = vrot.slane %v378, 2
      %v594 = vsel %vm569, %v591, %v593
      %v595 = vrot.slane %v379, 2
      %v596 = vrot.slane %v380, 2
      %v597 = vsel %vm569, %v595, %v596
      %v598 = vrot.slane %v381, 2
      %v599 = vsel %vm569, %v596, %v598
      %v600 = vrot.slane %v382, 2
      %v601 = vrot.slane %v383, 2
      %v602 = vsel %vm569, %v600, %v601
      %v603 = vrot.slane %v384, 2
      %v604 = vsel %vm569, %v601, %v603
      %v605 = vrot.slane %v385, 2
      %v606 = vrot.slane %v386, 2
      %v607 = vsel %vm569, %v605, %v606
      %v608 = vrot.slane %v387, 2
      %v609 = vsel %vm569, %v606, %v608
      %v610 = vrot.slane %v388, 2
      %v611 = vrot.slane %v389, 2
      %v612 = vsel %vm569, %v610, %v611
      %v613 = vrot.slane %v390, 2
      %v614 = vsel %vm569, %v611, %v613
      %v615 = vrot.slane %v391, 2
      %v616 = vrot.slane %v392, 2
      %v617 = vsel %vm569, %v615, %v616
      %v618 = vrot.slane %v393, 2
      %v619 = vsel %vm569, %v616, %v618
      %v620 = vrot.slane %v394, 2
      %v621 = vrot.slane %v395, 2
      %v622 = vsel %vm569, %v620, %v621
      %v623 = vrot.slane %v396, 2
      %v624 = vsel %vm569, %v621, %v623
      %v625 = vrot.slane %v397, 2
      %v626 = vrot.slane %v398, 2
      %v627 = vsel %vm569, %v625, %v626
      %v628 = vrot.slane %v399, 2
      %v629 = vsel %vm569, %v626, %v628
      %630 = vrot.lane.b32.xlu0 %v572, 6
      %v631 = vpop.permute.xlu0 %630
      %632 = vrot.lane.b32.xlu0 %v574, 6
      %v633 = vpop.permute.xlu0 %632
      %634 = vrot.lane.b32.xlu0 %v577, 6
      %v635 = vpop.permute.xlu0 %634
      %636 = vrot.lane.b32.xlu0 %v579, 6
      %v637 = vpop.permute.xlu0 %636
      %638 = vrot.lane.b32.xlu0 %v582, 6
      %v639 = vpop.permute.xlu0 %638
      %640 = vrot.lane.b32.xlu0 %v584, 6
      %v641 = vpop.permute.xlu0 %640
      %642 = vrot.lane.b32.xlu0 %v587, 6
      %v643 = vpop.permute.xlu0 %642
      %644 = vrot.lane.b32.xlu0 %v589, 6
      %v645 = vpop.permute.xlu0 %644
      %646 = vrot.lane.b32.xlu0 %v592, 6
      %v647 = vpop.permute.xlu0 %646
      %648 = vrot.lane.b32.xlu0 %v594, 6
      %v649 = vpop.permute.xlu0 %648
      %650 = vrot.lane.b32.xlu0 %v597, 6
      %v651 = vpop.permute.xlu0 %650
      %652 = vrot.lane.b32.xlu0 %v599, 6
      %v653 = vpop.permute.xlu0 %652
      %654 = vrot.lane.b32.xlu0 %v602, 6
      %v655 = vpop.permute.xlu0 %654
      %656 = vrot.lane.b32.xlu0 %v604, 6
      %v657 = vpop.permute.xlu0 %656
      %658 = vrot.lane.b32.xlu0 %v607, 6
      %v659 = vpop.permute.xlu0 %658
      %660 = vrot.lane.b32.xlu0 %v609, 6
      %v661 = vpop.permute.xlu0 %660
      %662 = vrot.lane.b32.xlu0 %v612, 6
      %v663 = vpop.permute.xlu0 %662
      %664 = vrot.lane.b32.xlu0 %v614, 6
      %v665 = vpop.permute.xlu0 %664
      %666 = vrot.lane.b32.xlu0 %v617, 6
      %v667 = vpop.permute.xlu0 %666
      %668 = vrot.lane.b32.xlu0 %v619, 6
      %v669 = vpop.permute.xlu0 %668
      %670 = vrot.lane.b32.xlu0 %v622, 6
      %v671 = vpop.permute.xlu0 %670
      %672 = vrot.lane.b32.xlu0 %v624, 6
      %v673 = vpop.permute.xlu0 %672
      %674 = vrot.lane.b32.xlu0 %v627, 6
      %v675 = vpop.permute.xlu0 %674
      %676 = vrot.lane.b32.xlu0 %v629, 6
      %v677 = vpop.permute.xlu0 %676
      %vm702 = vcmask 23552
      %v703 = vsel %vm702, %v364, %v498
      %v704 = vsel %vm702, %v365, %v500
      %v705 = vsel %vm702, %v367, %v502
      %v706 = vsel %vm702, %v368, %v504
      %v707 = vsel %vm702, %v370, %v506
      %v708 = vsel %vm702, %v371, %v508
      %v709 = vsel %vm702, %v373, %v510
      %v710 = vsel %vm702, %v374, %v512
      %v711 = vsel %vm702, %v376, %v514
      %v712 = vsel %vm702, %v377, %v516
      %v713 = vsel %vm702, %v379, %v518
      %v714 = vsel %vm702, %v380, %v520
      %v715 = vsel %vm702, %v382, %v522
      %v716 = vsel %vm702, %v383, %v524
      %v717 = vsel %vm702, %v385, %v526
      %v718 = vsel %vm702, %v386, %v528
      %v719 = vsel %vm702, %v388, %v530
      %v720 = vsel %vm702, %v389, %v532
      %v721 = vsel %vm702, %v391, %v534
      %v722 = vsel %vm702, %v392, %v536
      %v723 = vsel %vm702, %v394, %v538
      %v724 = vsel %vm702, %v395, %v540
      %v725 = vsel %vm702, %v397, %v542
      %v726 = vsel %vm702, %v398, %v544
      %vm727 = vcmask 48128
      %v728 = vsel %vm727, %v703, %v631
      %v729 = vsel %vm727, %v704, %v633
      %v730 = vsel %vm727, %v705, %v635
      %v731 = vsel %vm727, %v706, %v637
      %v732 = vsel %vm727, %v707, %v639
      %v733 = vsel %vm727, %v708, %v641
      %v734 = vsel %vm727, %v709, %v643
      %v735 = vsel %vm727, %v710, %v645
      %v736 = vsel %vm727, %v711, %v647
      %v737 = vsel %vm727, %v712, %v649
      %v738 = vsel %vm727, %v713, %v651
      %v739 = vsel %vm727, %v714, %v653
      %v740 = vsel %vm727, %v715, %v655
      %v741 = vsel %vm727, %v716, %v657
      %v742 = vsel %vm727, %v717, %v659
      %v743 = vsel %vm727, %v718, %v661
      %v744 = vsel %vm727, %v719, %v663
      %v745 = vsel %vm727, %v720, %v665
      %v746 = vsel %vm727, %v721, %v667
      %v747 = vsel %vm727, %v722, %v669
      %v748 = vsel %vm727, %v723, %v671
      %v749 = vsel %vm727, %v724, %v673
      %v750 = vsel %vm727, %v725, %v675
      %v751 = vsel %vm727, %v726, %v677
      %772 = vrot.lane.b32.xlu0 %v730, 9
      %v773 = vpop.permute.xlu0 %772
      %774 = vrot.lane.b32.xlu0 %v731, 9
      %v775 = vpop.permute.xlu0 %774
      %776 = vrot.lane.b32.xlu0 %v732, 9
      %v777 = vpop.permute.xlu0 %776
      %778 = vrot.lane.b32.xlu0 %v733, 9
      %v779 = vpop.permute.xlu0 %778
      %780 = vrot.lane.b32.xlu0 %v734, 9
      %v781 = vpop.permute.xlu0 %780
      %782 = vrot.lane.b32.xlu0 %v735, 9
      %v783 = vpop.permute.xlu0 %782
      %784 = vrot.lane.b32.xlu0 %v736, 9
      %v785 = vpop.permute.xlu0 %784
      %786 = vrot.lane.b32.xlu0 %v737, 9
      %v787 = vpop.permute.xlu0 %786
      %788 = vrot.lane.b32.xlu0 %v738, 9
      %v789 = vpop.permute.xlu0 %788
      %790 = vrot.lane.b32.xlu0 %v739, 9
      %v791 = vpop.permute.xlu0 %790
      %792 = vrot.lane.b32.xlu0 %v740, 9
      %v793 = vpop.permute.xlu0 %792
      %794 = vrot.lane.b32.xlu0 %v741, 9
      %v795 = vpop.permute.xlu0 %794
      %796 = vrot.lane.b32.xlu0 %v742, 9
      %v797 = vpop.permute.xlu0 %796
      %798 = vrot.lane.b32.xlu0 %v743, 9
      %v799 = vpop.permute.xlu0 %798
      %800 = vrot.lane.b32.xlu0 %v744, 9
      %v801 = vpop.permute.xlu0 %800
      %802 = vrot.lane.b32.xlu0 %v745, 9
      %v803 = vpop.permute.xlu0 %802
      %804 = vrot.lane.b32.xlu0 %v746, 9
      %v805 = vpop.permute.xlu0 %804
      %806 = vrot.lane.b32.xlu0 %v747, 9
      %v807 = vpop.permute.xlu0 %806
      %808 = vrot.lane.b32.xlu0 %v748, 9
      %v809 = vpop.permute.xlu0 %808
      %810 = vrot.lane.b32.xlu0 %v749, 9
      %v811 = vpop.permute.xlu0 %810
      %834 = vrot.lane.b32.xlu0 %v732, 18
      %v835 = vpop.permute.xlu0 %834
      %836 = vrot.lane.b32.xlu0 %v733, 18
      %v837 = vpop.permute.xlu0 %836
      %838 = vrot.lane.b32.xlu0 %v734, 18
      %v839 = vpop.permute.xlu0 %838
      %840 = vrot.lane.b32.xlu0 %v735, 18
      %v841 = vpop.permute.xlu0 %840
      %842 = vrot.lane.b32.xlu0 %v736, 18
      %v843 = vpop.permute.xlu0 %842
      %844 = vrot.lane.b32.xlu0 %v737, 18
      %v845 = vpop.permute.xlu0 %844
      %846 = vrot.lane.b32.xlu0 %v738, 18
      %v847 = vpop.permute.xlu0 %846
      %848 = vrot.lane.b32.xlu0 %v739, 18
      %v849 = vpop.permute.xlu0 %848
      %850 = vrot.lane.b32.xlu0 %v740, 18
      %v851 = vpop.permute.xlu0 %850
      %852 = vrot.lane.b32.xlu0 %v741, 18
      %v853 = vpop.permute.xlu0 %852
      %854 = vrot.lane.b32.xlu0 %v742, 18
      %v855 = vpop.permute.xlu0 %854
      %856 = vrot.lane.b32.xlu0 %v743, 18
      %v857 = vpop.permute.xlu0 %856
      %858 = vrot.lane.b32.xlu0 %v744, 18
      %v859 = vpop.permute.xlu0 %858
      %860 = vrot.lane.b32.xlu0 %v745, 18
      %v861 = vpop.permute.xlu0 %860
      %862 = vrot.lane.b32.xlu0 %v746, 18
      %v863 = vpop.permute.xlu0 %862
      %864 = vrot.lane.b32.xlu0 %v747, 18
      %v865 = vpop.permute.xlu0 %864
      %866 = vrot.lane.b32.xlu0 %v748, 18
      %v867 = vpop.permute.xlu0 %866
      %868 = vrot.lane.b32.xlu0 %v749, 18
      %v869 = vpop.permute.xlu0 %868
      %870 = vrot.lane.b32.xlu0 %v750, 18
      %v871 = vpop.permute.xlu0 %870
      %872 = vrot.lane.b32.xlu0 %v751, 18
      %v873 = vpop.permute.xlu0 %872
      %vm894 = vcmask 72704
      %v895 = vsel %vm894, %v728, %v773
      %v896 = vsel %vm894, %v729, %v775
      %v897 = vsel %vm894, %v730, %v777
      %v898 = vsel %vm894, %v731, %v779
      %v899 = vsel %vm894, %v732, %v781
      %v900 = vsel %vm894, %v733, %v783
      %v901 = vsel %vm894, %v734, %v785
      %v902 = vsel %vm894, %v735, %v787
      %v903 = vsel %vm894, %v736, %v789
      %v904 = vsel %vm894, %v737, %v791
      %v905 = vsel %vm894, %v738, %v793
      %v906 = vsel %vm894, %v739, %v795
      %v907 = vsel %vm894, %v740, %v797
      %v908 = vsel %vm894, %v741, %v799
      %v909 = vsel %vm894, %v742, %v801
      %v910 = vsel %vm894, %v743, %v803
      %v911 = vsel %vm894, %v744, %v805
      %v912 = vsel %vm894, %v745, %v807
      %v913 = vsel %vm894, %v746, %v809
      %v914 = vsel %vm894, %v747, %v811
      %vm915 = vcmask 146432
      %v916 = vsel %vm915, %v895, %v835
      %v917 = vsel %vm915, %v896, %v837
      %v918 = vsel %vm915, %v897, %v839
      %v919 = vsel %vm915, %v898, %v841
      %v920 = vsel %vm915, %v899, %v843
      %v921 = vsel %vm915, %v900, %v845
      %v922 = vsel %vm915, %v901, %v847
      %v923 = vsel %vm915, %v902, %v849
      %v924 = vsel %vm915, %v903, %v851
      %v925 = vsel %vm915, %v904, %v853
      %v926 = vsel %vm915, %v905, %v855
      %v927 = vsel %vm915, %v906, %v857
      %v928 = vsel %vm915, %v907, %v859
      %v929 = vsel %vm915, %v908, %v861
      %v930 = vsel %vm915, %v909, %v863
      %v931 = vsel %vm915, %v910, %v865
      %v932 = vsel %vm915, %v911, %v867
      %v933 = vsel %vm915, %v912, %v869
      %v934 = vsel %vm915, %v913, %v871
      %v935 = vsel %vm915, %v914, %v873
      %v936 = vpack.c.bf16 %v917, %v916
      %v937 = vpack.c.bf16 %v919, %v918
      %v938 = vpack.c.bf16 %v921, %v920
      %v939 = vpack.c.bf16 %v923, %v922
      %v940 = vpack.c.bf16 %v925, %v924
      %v941 = vpack.c.bf16 %v927, %v926
      %v942 = vpack.c.bf16 %v929, %v928
      %v943 = vpack.c.bf16 %v931, %v930
      %v944 = vpack.c.bf16 %v933, %v932
      %v945 = vpack.c.bf16 %v935, %v934
      %v946 = vld [vmem:[%s3] sm:$0xf]
      %v947 = vld [vmem:[%s3 + $0x4] sm:$0xf]
      %v948 = vld [vmem:[%s3 + $0x8] sm:$0xf]
      %v949 = vld [vmem:[%s3 + $0xc] sm:$0x3]
      %v950 = vld [vmem:[%s4] sm:$0x1]
      %v952 = vlaneseq
      %v953 = vshrl.u32 %v952, 7
      %v954 = vsub.s32 0, %v953
      %v955 = vrot.slane %v950, %v954
      %v961 = vunpack.c.l.b16 %v946
      %v962 = vunpack.c.l.b16 %v947
      %v963 = vunpack.c.l.b16 %v948
      %v964 = vunpack.c.l.b16 %v949
      %v965 = vpack.c.b16 %v962, %v961
      %v966 = vpack.c.b16 %v964, %v963
      %vm968 = vcmask 220160
      %v970 = vsel %vm968, %v936, 0
      %v973 = vsel %vm968, %v937, 0
      %v976 = vsel %vm968, %v938, 0
      %v979 = vsel %vm968, %v939, 0
      %v982 = vsel %vm968, %v940, 0
      %v985 = vsel %vm968, %v941, 0
      %v988 = vsel %vm968, %v942, 0
      %v991 = vsel %vm968, %v943, 0
      %v994 = vsel %vm968, %v944, 0
      %v997 = vsel %vm968, %v945, 0
      %vm999 = vcmask 1044480
      %v1000 = vsel %vm999, 4294967295, 65535
      %v1001 = vsel %vm569, %v1000, 0
      %v1003 = vand.u32 %v966, %v1001
      %1005 = vmatprep.subr.bf16.mxu0 0
      %1006 = vmatpush1.bf16.msra.mxu0 0
      %1007 = vmatprep.subr.bf16.mxu0 0
      %1008 = vmatpush1.bf16.msra.mxu0 0
      %1009 = vmatprep.subr.bf16.mxu0 0
      %1010 = vmatpush1.bf16.msra.mxu0 0
      %1011 = vmatprep.subr.bf16.mxu0 0
      %1012 = vmatpush1.bf16.msra.mxu0 0
      %1013 = vmatprep.subr.bf16.mxu0 0
      %1014 = vmatpush1.bf16.msra.mxu0 0
      %1015 = vmatprep.subr.bf16.mxu0 0
      %1016 = vmatpush1.bf16.msra.mxu0 0
      %1017 = vmatprep.subr.bf16.mxu0 0
      %1018 = vmatpush1.bf16.msra.mxu0 %v1003
      %1019 = vmatprep.subr.bf16.mxu0 0
      %1020 = vmatpush1.bf16.msra.mxu0 %v965
      %1021 = vmatprep.subr.bf16.mxu0 0
      %1022 = vmatpush2.bf16.msra.mxu0 0
      %1023 = vmatprep.subr.bf16.mxu0 0
      %1024 = vmatpush2.bf16.msra.mxu0 0
      %1025 = vmatprep.subr.bf16.mxu0 0
      %1026 = vmatpush2.bf16.msra.mxu0 0
      %1027 = vmatprep.subr.bf16.mxu0 0
      %1028 = vmatpush2.bf16.msra.mxu0 0
      %1029 = vmatprep.subr.bf16.mxu0 0
      %1030 = vmatpush2.bf16.msra.mxu0 0
      %1031 = vmatprep.subr.bf16.mxu0 0
      %1032 = vmatpush2.bf16.msra.mxu0 0
      %1033 = vmatprep.subr.bf16.mxu0 0
      %1034 = vmatpush2.bf16.msra.mxu0 0
      %1035 = vmatprep.subr.bf16.mxu0 0
      %1036 = vmatpush2.bf16.msra.mxu0 0
      %1037 = vmatprep.mubr.bf16.mxu0 0
      %1038 = vmatmul.mubr.bf16.gmra.mxu0 %v970
      %v1039 = vpop.f32.mrf.mxu0
      %v1040 = vadd.f32 %v955, %v1039
      %v1041 = vpop.f32.mrf.mxu0
      %v1042 = vpop.f32.mrf.mxu0
      %v1043 = vadd.f32 %v955, %v1042
      %v1044 = vpop.f32.mrf.mxu0
      %1045 = vmatprep.mubr.bf16.mxu0 0
      %1046 = vmatmul.mubr.bf16.gmra.mxu0 %v973
      %v1047 = vpop.f32.mrf.mxu0
      %v1048 = vadd.f32 %v955, %v1047
      %v1049 = vpop.f32.mrf.mxu0
      %v1050 = vpop.f32.mrf.mxu0
      %v1051 = vadd.f32 %v955, %v1050
      %v1052 = vpop.f32.mrf.mxu0
      %1053 = vmatprep.mubr.bf16.mxu0 0
      %1054 = vmatmul.mubr.bf16.gmra.mxu0 %v976
      %v1055 = vpop.f32.mrf.mxu0
      %v1056 = vadd.f32 %v955, %v1055
      %v1057 = vpop.f32.mrf.mxu0
      %v1058 = vpop.f32.mrf.mxu0
      %v1059 = vadd.f32 %v955, %v1058
      %v1060 = vpop.f32.mrf.mxu0
      %1061 = vmatprep.mubr.bf16.mxu0 0
      %1062 = vmatmul.mubr.bf16.gmra.mxu0 %v979
      %v1063 = vpop.f32.mrf.mxu0
      %v1064 = vadd.f32 %v955, %v1063
      %v1065 = vpop.f32.mrf.mxu0
      %v1066 = vpop.f32.mrf.mxu0
      %v1067 = vadd.f32 %v955, %v1066
      %v1068 = vpop.f32.mrf.mxu0
      %1069 = vmatprep.mubr.bf16.mxu0 0
      %1070 = vmatmul.mubr.bf16.gmra.mxu0 %v982
      %v1071 = vpop.f32.mrf.mxu0
      %v1072 = vadd.f32 %v955, %v1071
      %v1073 = vpop.f32.mrf.mxu0
      %v1074 = vpop.f32.mrf.mxu0
      %v1075 = vadd.f32 %v955, %v1074
      %v1076 = vpop.f32.mrf.mxu0
      %1077 = vmatprep.mubr.bf16.mxu0 0
      %1078 = vmatmul.mubr.bf16.gmra.mxu0 %v985
      %v1079 = vpop.f32.mrf.mxu0
      %v1080 = vadd.f32 %v955, %v1079
      %v1081 = vpop.f32.mrf.mxu0
      %v1082 = vpop.f32.mrf.mxu0
      %v1083 = vadd.f32 %v955, %v1082
      %v1084 = vpop.f32.mrf.mxu0
      %1085 = vmatprep.mubr.bf16.mxu0 0
      %1086 = vmatmul.mubr.bf16.gmra.mxu0 %v988
      %v1087 = vpop.f32.mrf.mxu0
      %v1088 = vadd.f32 %v955, %v1087
      %v1089 = vpop.f32.mrf.mxu0
      %v1090 = vpop.f32.mrf.mxu0
      %v1091 = vadd.f32 %v955, %v1090
      %v1092 = vpop.f32.mrf.mxu0
      %1093 = vmatprep.mubr.bf16.mxu0 0
      %1094 = vmatmul.mubr.bf16.gmra.mxu0 %v991
      %v1095 = vpop.f32.mrf.mxu0
      %v1096 = vadd.f32 %v955, %v1095
      %v1097 = vpop.f32.mrf.mxu0
      %v1098 = vpop.f32.mrf.mxu0
      %v1099 = vadd.f32 %v955, %v1098
      %v1100 = vpop.f32.mrf.mxu0
      %1101 = vmatprep.mubr.bf16.mxu0 0
      %1102 = vmatmul.mubr.bf16.gmra.mxu0 %v994
      %v1103 = vpop.f32.mrf.mxu0
      %v1104 = vadd.f32 %v955, %v1103
      %v1105 = vpop.f32.mrf.mxu0
      %v1106 = vpop.f32.mrf.mxu0
      %v1107 = vadd.f32 %v955, %v1106
      %v1108 = vpop.f32.mrf.mxu0
      %1109 = vmatprep.mubr.bf16.mxu0 0
      %1110 = vmatmul.mubr.bf16.gmra.mxu0 %v997
      %v1111 = vpop.f32.mrf.mxu0
      %v1112 = vadd.f32 %v955, %v1111
      %v1113 = vpop.f32.mrf.mxu0
      %v1114 = vpop.f32.mrf.mxu0
      %v1115 = vadd.f32 %v955, %v1114
      %v1116 = vpop.f32.mrf.mxu0
      %1117 = vdwg.mxu0
      %v1118 = vxor.u32 %v1040, 2147483648
      %v1119 = vxor.u32 %v1043, 2147483648
      %v1120 = vxor.u32 %v1048, 2147483648
      %v1121 = vxor.u32 %v1051, 2147483648
      %v1122 = vxor.u32 %v1056, 2147483648
      %v1123 = vxor.u32 %v1059, 2147483648
      %v1124 = vxor.u32 %v1064, 2147483648
      %v1125 = vxor.u32 %v1067, 2147483648
      %v1126 = vxor.u32 %v1072, 2147483648
      %v1127 = vxor.u32 %v1075, 2147483648
      %v1128 = vxor.u32 %v1080, 2147483648
      %v1129 = vxor.u32 %v1083, 2147483648
      %v1130 = vxor.u32 %v1088, 2147483648
      %v1131 = vxor.u32 %v1091, 2147483648
      %v1132 = vxor.u32 %v1096, 2147483648
      %v1133 = vxor.u32 %v1099, 2147483648
      %v1134 = vxor.u32 %v1104, 2147483648
      %v1135 = vxor.u32 %v1107, 2147483648
      %v1136 = vxor.u32 %v1112, 2147483648
      %v1137 = vxor.u32 %v1115, 2147483648
      %v1138 = vmul.f32 %v1118, 1.442695
      %v1139 = vpow.pop %v1138
      %v1140 = vmul.f32 %v1119, 1.442695
      %v1141 = vpow.pop %v1140
      %v1142 = vmul.f32 %v1120, 1.442695
      %v1143 = vpow.pop %v1142
      %v1144 = vmul.f32 %v1121, 1.442695
      %v1145 = vpow.pop %v1144
      %v1146 = vmul.f32 %v1122, 1.442695
      %v1147 = vpow.pop %v1146
      %v1148 = vmul.f32 %v1123, 1.442695
      %v1149 = vpow.pop %v1148
      %v1150 = vmul.f32 %v1124, 1.442695
      %v1151 = vpow.pop %v1150
      %v1152 = vmul.f32 %v1125, 1.442695
      %v1153 = vpow.pop %v1152
      %v1154 = vmul.f32 %v1126, 1.442695
      %v1155 = vpow.pop %v1154
      %v1156 = vmul.f32 %v1127, 1.442695
      %v1157 = vpow.pop %v1156
      %v1158 = vmul.f32 %v1128, 1.442695
      %v1159 = vpow.pop %v1158
      %v1160 = vmul.f32 %v1129, 1.442695
      %v1161 = vpow.pop %v1160
      %v1162 = vmul.f32 %v1130, 1.442695
      %v1163 = vpow.pop %v1162
      %v1164 = vmul.f32 %v1131, 1.442695
      %v1165 = vpow.pop %v1164
      %v1166 = vmul.f32 %v1132, 1.442695
      %v1167 = vpow.pop %v1166
      %v1168 = vmul.f32 %v1133, 1.442695
      %v1169 = vpow.pop %v1168
      %v1170 = vmul.f32 %v1134, 1.442695
      %v1171 = vpow.pop %v1170
      %v1172 = vmul.f32 %v1135, 1.442695
      %v1173 = vpow.pop %v1172
      %v1174 = vmul.f32 %v1136, 1.442695
      %v1175 = vpow.pop %v1174
      %v1176 = vmul.f32 %v1137, 1.442695
      %v1177 = vpow.pop %v1176
      %v1178 = vadd.f32 %v1139, 1.0
      %v1179 = vadd.f32 %v1141, 1.0
      %v1180 = vadd.f32 %v1143, 1.0
      %v1181 = vadd.f32 %v1145, 1.0
      %v1182 = vadd.f32 %v1147, 1.0
      %v1183 = vadd.f32 %v1149, 1.0
      %v1184 = vadd.f32 %v1151, 1.0
      %v1185 = vadd.f32 %v1153, 1.0
      %v1186 = vadd.f32 %v1155, 1.0
      %v1187 = vadd.f32 %v1157, 1.0
      %v1188 = vadd.f32 %v1159, 1.0
      %v1189 = vadd.f32 %v1161, 1.0
      %v1190 = vadd.f32 %v1163, 1.0
      %v1191 = vadd.f32 %v1165, 1.0
      %v1192 = vadd.f32 %v1167, 1.0
      %v1193 = vadd.f32 %v1169, 1.0
      %v1194 = vadd.f32 %v1171, 1.0
      %v1195 = vadd.f32 %v1173, 1.0
      %v1196 = vadd.f32 %v1175, 1.0
      %v1197 = vadd.f32 %v1177, 1.0
      %v1198 = vrcp.pop %v1178
      %v1199 = vmul.f32 1.0, %v1198
      %v1200 = vrcp.pop %v1179
      %v1201 = vmul.f32 1.0, %v1200
      %v1202 = vrcp.pop %v1180
      %v1203 = vmul.f32 1.0, %v1202
      %v1204 = vrcp.pop %v1181
      %v1205 = vmul.f32 1.0, %v1204
      %v1206 = vrcp.pop %v1182
      %v1207 = vmul.f32 1.0, %v1206
      %v1208 = vrcp.pop %v1183
      %v1209 = vmul.f32 1.0, %v1208
      %v1210 = vrcp.pop %v1184
      %v1211 = vmul.f32 1.0, %v1210
      %v1212 = vrcp.pop %v1185
      %v1213 = vmul.f32 1.0, %v1212
      %v1214 = vrcp.pop %v1186
      %v1215 = vmul.f32 1.0, %v1214
      %v1216 = vrcp.pop %v1187
      %v1217 = vmul.f32 1.0, %v1216
      %v1218 = vrcp.pop %v1188
      %v1219 = vmul.f32 1.0, %v1218
      %v1220 = vrcp.pop %v1189
      %v1221 = vmul.f32 1.0, %v1220
      %v1222 = vrcp.pop %v1190
      %v1223 = vmul.f32 1.0, %v1222
      %v1224 = vrcp.pop %v1191
      %v1225 = vmul.f32 1.0, %v1224
      %v1226 = vrcp.pop %v1192
      %v1227 = vmul.f32 1.0, %v1226
      %v1228 = vrcp.pop %v1193
      %v1229 = vmul.f32 1.0, %v1228
      %v1230 = vrcp.pop %v1194
      %v1231 = vmul.f32 1.0, %v1230
      %v1232 = vrcp.pop %v1195
      %v1233 = vmul.f32 1.0, %v1232
      %v1234 = vrcp.pop %v1196
      %v1235 = vmul.f32 1.0, %v1234
      %v1236 = vrcp.pop %v1197
      %v1237 = vmul.f32 1.0, %v1236
      %v1238 = vmul.f32 %v1040, %v1199
      %v1239 = vmul.f32 %v1043, %v1201
      %v1240 = vmul.f32 %v1048, %v1203
      %v1241 = vmul.f32 %v1051, %v1205
      %v1242 = vmul.f32 %v1056, %v1207
      %v1243 = vmul.f32 %v1059, %v1209
      %v1244 = vmul.f32 %v1064, %v1211
      %v1245 = vmul.f32 %v1067, %v1213
      %v1246 = vmul.f32 %v1072, %v1215
      %v1247 = vmul.f32 %v1075, %v1217
      %v1248 = vmul.f32 %v1080, %v1219
      %v1249 = vmul.f32 %v1083, %v1221
      %v1250 = vmul.f32 %v1088, %v1223
      %v1251 = vmul.f32 %v1091, %v1225
      %v1252 = vmul.f32 %v1096, %v1227
      %v1253 = vmul.f32 %v1099, %v1229
      %v1254 = vmul.f32 %v1104, %v1231
      %v1255 = vmul.f32 %v1107, %v1233
      %v1256 = vmul.f32 %v1112, %v1235
      %v1257 = vmul.f32 %v1115, %v1237
      %s1258 = ssub.s32 %s361, 1
      %v1259 = vstv %s1258
      %v1260 = vadd.s32 %v1259, 1
      %v1261 = vadd.s32 %v1259, 2
      %v1262 = vadd.s32 %v1259, 3
      %v1263 = vadd.s32 %v1259, 4
      %v1264 = vadd.s32 %v1259, 5
      %v1265 = vadd.s32 %v1259, 6
      %v1266 = vadd.s32 %v1259, 7
      %v1267 = vadd.s32 %v1259, 8
      %v1268 = vadd.s32 %v1259, 9
      %vm1269 = vcmp.ge.s32.totalorder %v1259, 0
      %vm1270 = vcmp.ge.s32.totalorder %v1260, 0
      %vm1271 = vcmp.ge.s32.totalorder %v1261, 0
      %vm1272 = vcmp.ge.s32.totalorder %v1262, 0
      %vm1273 = vcmp.ge.s32.totalorder %v1263, 0
      %vm1274 = vcmp.ge.s32.totalorder %v1264, 0
      %vm1275 = vcmp.ge.s32.totalorder %v1265, 0
      %vm1276 = vcmp.ge.s32.totalorder %v1266, 0
      %vm1277 = vcmp.ge.s32.totalorder %v1267, 0
      %vm1278 = vcmp.ge.s32.totalorder %v1268, 0
      %vm1279 = vcmp.lt.s32.totalorder %v1259, 16
      %vm1280 = vcmp.lt.s32.totalorder %v1260, 16
      %vm1281 = vcmp.lt.s32.totalorder %v1261, 16
      %vm1282 = vcmp.lt.s32.totalorder %v1262, 16
      %vm1283 = vcmp.lt.s32.totalorder %v1263, 16
      %vm1284 = vcmp.lt.s32.totalorder %v1264, 16
      %vm1285 = vcmp.lt.s32.totalorder %v1265, 16
      %vm1286 = vcmp.lt.s32.totalorder %v1266, 16
      %vm1287 = vcmp.lt.s32.totalorder %v1267, 16
      %vm1288 = vcmp.lt.s32.totalorder %v1268, 16
      %vm1289 = vmand %vm1269, %vm1279
      %vm1290 = vmand %vm1270, %vm1280
      %vm1291 = vmand %vm1271, %vm1281
      %vm1292 = vmand %vm1272, %vm1282
      %vm1293 = vmand %vm1273, %vm1283
      %vm1294 = vmand %vm1274, %vm1284
      %vm1295 = vmand %vm1275, %vm1285
      %vm1296 = vmand %vm1276, %vm1286
      %vm1297 = vmand %vm1277, %vm1287
      %vm1298 = vmand %vm1278, %vm1288
      %v1299 = vsel %vm1289, 1, 0
      %v1300 = vsel %vm1290, 1, 0
      %v1301 = vsel %vm1291, 1, 0
      %v1302 = vsel %vm1292, 1, 0
      %v1303 = vsel %vm1293, 1, 0
      %v1304 = vsel %vm1294, 1, 0
      %v1305 = vsel %vm1295, 1, 0
      %v1306 = vsel %vm1296, 1, 0
      %v1307 = vsel %vm1297, 1, 0
      %v1308 = vsel %vm1298, 1, 0
      %vm1309 = vcmp.eq.s32.totalorder %v1299, 1
      %vm1310 = vcmp.eq.s32.totalorder %v1300, 1
      %vm1311 = vcmp.eq.s32.totalorder %v1301, 1
      %vm1312 = vcmp.eq.s32.totalorder %v1302, 1
      %vm1313 = vcmp.eq.s32.totalorder %v1303, 1
      %vm1314 = vcmp.eq.s32.totalorder %v1304, 1
      %vm1315 = vcmp.eq.s32.totalorder %v1305, 1
      %vm1316 = vcmp.eq.s32.totalorder %v1306, 1
      %vm1317 = vcmp.eq.s32.totalorder %v1307, 1
      %vm1318 = vcmp.eq.s32.totalorder %v1308, 1
      %v1319 = vsel %vm1309, %v1238, 0.0
      %v1320 = vsel %vm1309, %v1239, 0.0
      %v1321 = vsel %vm1310, %v1240, 0.0
      %v1322 = vsel %vm1310, %v1241, 0.0
      %v1323 = vsel %vm1311, %v1242, 0.0
      %v1324 = vsel %vm1311, %v1243, 0.0
      %v1325 = vsel %vm1312, %v1244, 0.0
      %v1326 = vsel %vm1312, %v1245, 0.0
      %v1327 = vsel %vm1313, %v1246, 0.0
      %v1328 = vsel %vm1313, %v1247, 0.0
      %v1329 = vsel %vm1314, %v1248, 0.0
      %v1330 = vsel %vm1314, %v1249, 0.0
      %v1331 = vsel %vm1315, %v1250, 0.0
      %v1332 = vsel %vm1315, %v1251, 0.0
      %v1333 = vsel %vm1316, %v1252, 0.0
      %v1334 = vsel %vm1316, %v1253, 0.0
      %v1335 = vsel %vm1317, %v1254, 0.0
      %v1336 = vsel %vm1317, %v1255, 0.0
      %v1337 = vsel %vm1318, %v1256, 0.0
      %v1338 = vsel %vm1318, %v1257, 0.0
      %vm1359 = vcmask 1040384
      %v1360 = vrot.slane %v1319, 7
      %v1361 = vrot.slane %v1320, 7
      %v1362 = vsel %vm1359, %v1360, %v1361
      %v1363 = vrot.slane %v1321, 7
      %v1364 = vrot.slane %v1322, 7
      %v1365 = vsel %vm1359, %v1363, %v1364
      %v1366 = vrot.slane %v1323, 7
      %v1367 = vrot.slane %v1324, 7
      %v1368 = vsel %vm1359, %v1366, %v1367
      %v1369 = vrot.slane %v1325, 7
      %v1370 = vrot.slane %v1326, 7
      %v1371 = vsel %vm1359, %v1369, %v1370
      %v1372 = vrot.slane %v1327, 7
      %v1373 = vrot.slane %v1328, 7
      %v1374 = vsel %vm1359, %v1372, %v1373
      %v1375 = vrot.slane %v1329, 7
      %v1376 = vrot.slane %v1330, 7
      %v1377 = vsel %vm1359, %v1375, %v1376
      %v1378 = vrot.slane %v1331, 7
      %v1379 = vrot.slane %v1332, 7
      %v1380 = vsel %vm1359, %v1378, %v1379
      %v1381 = vrot.slane %v1333, 7
      %v1382 = vrot.slane %v1334, 7
      %v1383 = vsel %vm1359, %v1381, %v1382
      %v1384 = vrot.slane %v1335, 7
      %v1385 = vrot.slane %v1336, 7
      %v1386 = vsel %vm1359, %v1384, %v1385
      %v1387 = vrot.slane %v1337, 7
      %v1388 = vrot.slane %v1338, 7
      %v1389 = vsel %vm1359, %v1387, %v1388
      %v1420 = vsel %vm1359, 0.0, %v1360
      %v1421 = vsel %vm1359, 0.0, %v1363
      %v1422 = vsel %vm1359, 0.0, %v1366
      %v1423 = vsel %vm1359, 0.0, %v1369
      %v1424 = vsel %vm1359, 0.0, %v1372
      %v1425 = vsel %vm1359, 0.0, %v1375
      %v1426 = vsel %vm1359, 0.0, %v1378
      %v1427 = vsel %vm1359, 0.0, %v1381
      %v1428 = vsel %vm1359, 0.0, %v1384
      %v1429 = vsel %vm1359, 0.0, %v1387
      %v1430 = vsel %vm1359, %v1361, 0.0
      %v1431 = vsel %vm1359, %v1364, 0.0
      %v1432 = vsel %vm1359, %v1367, 0.0
      %v1433 = vsel %vm1359, %v1370, 0.0
      %v1434 = vsel %vm1359, %v1373, 0.0
      %v1435 = vsel %vm1359, %v1376, 0.0
      %v1436 = vsel %vm1359, %v1379, 0.0
      %v1437 = vsel %vm1359, %v1382, 0.0
      %v1438 = vsel %vm1359, %v1385, 0.0
      %v1439 = vsel %vm1359, %v1388, 0.0
      %v1460 = vrot.slane %v1420, 1
      %v1461 = vrot.slane %v1362, 1
      %v1462 = vsel %vm436, %v1460, %v1461
      %v1463 = vrot.slane %v1430, 1
      %v1464 = vsel %vm436, %v1461, %v1463
      %v1465 = vrot.slane %v1421, 1
      %v1466 = vrot.slane %v1365, 1
      %v1467 = vsel %vm436, %v1465, %v1466
      %v1468 = vrot.slane %v1431, 1
      %v1469 = vsel %vm436, %v1466, %v1468
      %v1470 = vrot.slane %v1422, 1
      %v1471 = vrot.slane %v1368, 1
      %v1472 = vsel %vm436, %v1470, %v1471
      %v1473 = vrot.slane %v1432, 1
      %v1474 = vsel %vm436, %v1471, %v1473
      %v1475 = vrot.slane %v1423, 1
      %v1476 = vrot.slane %v1371, 1
      %v1477 = vsel %vm436, %v1475, %v1476
      %v1478 = vrot.slane %v1433, 1
      %v1479 = vsel %vm436, %v1476, %v1478
      %v1480 = vrot.slane %v1424, 1
      %v1481 = vrot.slane %v1374, 1
      %v1482 = vsel %vm436, %v1480, %v1481
      %v1483 = vrot.slane %v1434, 1
      %v1484 = vsel %vm436, %v1481, %v1483
      %v1485 = vrot.slane %v1425, 1
      %v1486 = vrot.slane %v1377, 1
      %v1487 = vsel %vm436, %v1485, %v1486
      %v1488 = vrot.slane %v1435, 1
      %v1489 = vsel %vm436, %v1486, %v1488
      %v1490 = vrot.slane %v1426, 1
      %v1491 = vrot.slane %v1380, 1
      %v1492 = vsel %vm436, %v1490, %v1491
      %v1493 = vrot.slane %v1436, 1
      %v1494 = vsel %vm436, %v1491, %v1493
      %v1495 = vrot.slane %v1427, 1
      %v1496 = vrot.slane %v1383, 1
      %v1497 = vsel %vm436, %v1495, %v1496
      %v1498 = vrot.slane %v1437, 1
      %v1499 = vsel %vm436, %v1496, %v1498
      %v1500 = vrot.slane %v1428, 1
      %v1501 = vrot.slane %v1386, 1
      %v1502 = vsel %vm436, %v1500, %v1501
      %v1503 = vrot.slane %v1438, 1
      %v1504 = vsel %vm436, %v1501, %v1503
      %v1505 = vrot.slane %v1429, 1
      %v1506 = vrot.slane %v1389, 1
      %v1507 = vsel %vm436, %v1505, %v1506
      %v1508 = vrot.slane %v1439, 1
      %v1509 = vsel %vm436, %v1506, %v1508
      %1510 = vrot.lane.b32.xlu0 %v1462, 16
      %v1511 = vpop.permute.xlu0 %1510
      %1512 = vrot.lane.b32.xlu0 %v1464, 16
      %v1513 = vpop.permute.xlu0 %1512
      %1514 = vrot.lane.b32.xlu0 %v1467, 16
      %v1515 = vpop.permute.xlu0 %1514
      %1516 = vrot.lane.b32.xlu0 %v1469, 16
      %v1517 = vpop.permute.xlu0 %1516
      %1518 = vrot.lane.b32.xlu0 %v1472, 16
      %v1519 = vpop.permute.xlu0 %1518
      %1520 = vrot.lane.b32.xlu0 %v1474, 16
      %v1521 = vpop.permute.xlu0 %1520
      %1522 = vrot.lane.b32.xlu0 %v1477, 16
      %v1523 = vpop.permute.xlu0 %1522
      %1524 = vrot.lane.b32.xlu0 %v1479, 16
      %v1525 = vpop.permute.xlu0 %1524
      %1526 = vrot.lane.b32.xlu0 %v1482, 16
      %v1527 = vpop.permute.xlu0 %1526
      %1528 = vrot.lane.b32.xlu0 %v1484, 16
      %v1529 = vpop.permute.xlu0 %1528
      %1530 = vrot.lane.b32.xlu0 %v1487, 16
      %v1531 = vpop.permute.xlu0 %1530
      %1532 = vrot.lane.b32.xlu0 %v1489, 16
      %v1533 = vpop.permute.xlu0 %1532
      %1534 = vrot.lane.b32.xlu0 %v1492, 16
      %v1535 = vpop.permute.xlu0 %1534
      %1536 = vrot.lane.b32.xlu0 %v1494, 16
      %v1537 = vpop.permute.xlu0 %1536
      %1538 = vrot.lane.b32.xlu0 %v1497, 16
      %v1539 = vpop.permute.xlu0 %1538
      %1540 = vrot.lane.b32.xlu0 %v1499, 16
      %v1541 = vpop.permute.xlu0 %1540
      %1542 = vrot.lane.b32.xlu0 %v1502, 16
      %v1543 = vpop.permute.xlu0 %1542
      %1544 = vrot.lane.b32.xlu0 %v1504, 16
      %v1545 = vpop.permute.xlu0 %1544
      %1546 = vrot.lane.b32.xlu0 %v1507, 16
      %v1547 = vpop.permute.xlu0 %1546
      %1548 = vrot.lane.b32.xlu0 %v1509, 16
      %v1549 = vpop.permute.xlu0 %1548
      %v1570 = vrot.slane %v1420, 2
      %v1571 = vrot.slane %v1362, 2
      %v1572 = vsel %vm569, %v1570, %v1571
      %v1573 = vrot.slane %v1430, 2
      %v1574 = vsel %vm569, %v1571, %v1573
      %v1575 = vrot.slane %v1421, 2
      %v1576 = vrot.slane %v1365, 2
      %v1577 = vsel %vm569, %v1575, %v1576
      %v1578 = vrot.slane %v1431, 2
      %v1579 = vsel %vm569, %v1576, %v1578
      %v1580 = vrot.slane %v1422, 2
      %v1581 = vrot.slane %v1368, 2
      %v1582 = vsel %vm569, %v1580, %v1581
      %v1583 = vrot.slane %v1432, 2
      %v1584 = vsel %vm569, %v1581, %v1583
      %v1585 = vrot.slane %v1423, 2
      %v1586 = vrot.slane %v1371, 2
      %v1587 = vsel %vm569, %v1585, %v1586
      %v1588 = vrot.slane %v1433, 2
      %v1589 = vsel %vm569, %v1586, %v1588
      %v1590 = vrot.slane %v1424, 2
      %v1591 = vrot.slane %v1374, 2
      %v1592 = vsel %vm569, %v1590, %v1591
      %v1593 = vrot.slane %v1434, 2
      %v1594 = vsel %vm569, %v1591, %v1593
      %v1595 = vrot.slane %v1425, 2
      %v1596 = vrot.slane %v1377, 2
      %v1597 = vsel %vm569, %v1595, %v1596
      %v1598 = vrot.slane %v1435, 2
      %v1599 = vsel %vm569, %v1596, %v1598
      %v1600 = vrot.slane %v1426, 2
      %v1601 = vrot.slane %v1380, 2
      %v1602 = vsel %vm569, %v1600, %v1601
      %v1603 = vrot.slane %v1436, 2
      %v1604 = vsel %vm569, %v1601, %v1603
      %v1605 = vrot.slane %v1427, 2
      %v1606 = vrot.slane %v1383, 2
      %v1607 = vsel %vm569, %v1605, %v1606
      %v1608 = vrot.slane %v1437, 2
      %v1609 = vsel %vm569, %v1606, %v1608
      %v1610 = vrot.slane %v1428, 2
      %v1611 = vrot.slane %v1386, 2
      %v1612 = vsel %vm569, %v1610, %v1611
      %v1613 = vrot.slane %v1438, 2
      %v1614 = vsel %vm569, %v1611, %v1613
      %v1615 = vrot.slane %v1429, 2
      %v1616 = vrot.slane %v1389, 2
      %v1617 = vsel %vm569, %v1615, %v1616
      %v1618 = vrot.slane %v1439, 2
      %v1619 = vsel %vm569, %v1616, %v1618
      %1620 = vrot.lane.b32.xlu0 %v1572, 32
      %v1621 = vpop.permute.xlu0 %1620
      %1622 = vrot.lane.b32.xlu0 %v1574, 32
      %v1623 = vpop.permute.xlu0 %1622
      %1624 = vrot.lane.b32.xlu0 %v1577, 32
      %v1625 = vpop.permute.xlu0 %1624
      %1626 = vrot.lane.b32.xlu0 %v1579, 32
      %v1627 = vpop.permute.xlu0 %1626
      %1628 = vrot.lane.b32.xlu0 %v1582, 32
      %v1629 = vpop.permute.xlu0 %1628
      %1630 = vrot.lane.b32.xlu0 %v1584, 32
      %v1631 = vpop.permute.xlu0 %1630
      %1632 = vrot.lane.b32.xlu0 %v1587, 32
      %v1633 = vpop.permute.xlu0 %1632
      %1634 = vrot.lane.b32.xlu0 %v1589, 32
      %v1635 = vpop.permute.xlu0 %1634
      %1636 = vrot.lane.b32.xlu0 %v1592, 32
      %v1637 = vpop.permute.xlu0 %1636
      %1638 = vrot.lane.b32.xlu0 %v1594, 32
      %v1639 = vpop.permute.xlu0 %1638
      %1640 = vrot.lane.b32.xlu0 %v1597, 32
      %v1641 = vpop.permute.xlu0 %1640
      %1642 = vrot.lane.b32.xlu0 %v1599, 32
      %v1643 = vpop.permute.xlu0 %1642
      %1644 = vrot.lane.b32.xlu0 %v1602, 32
      %v1645 = vpop.permute.xlu0 %1644
      %1646 = vrot.lane.b32.xlu0 %v1604, 32
      %v1647 = vpop.permute.xlu0 %1646
      %1648 = vrot.lane.b32.xlu0 %v1607, 32
      %v1649 = vpop.permute.xlu0 %1648
      %1650 = vrot.lane.b32.xlu0 %v1609, 32
      %v1651 = vpop.permute.xlu0 %1650
      %1652 = vrot.lane.b32.xlu0 %v1612, 32
      %v1653 = vpop.permute.xlu0 %1652
      %1654 = vrot.lane.b32.xlu0 %v1614, 32
      %v1655 = vpop.permute.xlu0 %1654
      %1656 = vrot.lane.b32.xlu0 %v1617, 32
      %v1657 = vpop.permute.xlu0 %1656
      %1658 = vrot.lane.b32.xlu0 %v1619, 32
      %v1659 = vpop.permute.xlu0 %1658
      %vm1680 = vcmask 130048
      %v1681 = vsel %vm1680, %v1420, %v1511
      %v1682 = vsel %vm1680, %v1362, %v1513
      %v1683 = vsel %vm1680, %v1421, %v1515
      %v1684 = vsel %vm1680, %v1365, %v1517
      %v1685 = vsel %vm1680, %v1422, %v1519
      %v1686 = vsel %vm1680, %v1368, %v1521
      %v1687 = vsel %vm1680, %v1423, %v1523
      %v1688 = vsel %vm1680, %v1371, %v1525
      %v1689 = vsel %vm1680, %v1424, %v1527
      %v1690 = vsel %vm1680, %v1374, %v1529
      %v1691 = vsel %vm1680, %v1425, %v1531
      %v1692 = vsel %vm1680, %v1377, %v1533
      %v1693 = vsel %vm1680, %v1426, %v1535
      %v1694 = vsel %vm1680, %v1380, %v1537
      %v1695 = vsel %vm1680, %v1427, %v1539
      %v1696 = vsel %vm1680, %v1383, %v1541
      %v1697 = vsel %vm1680, %v1428, %v1543
      %v1698 = vsel %vm1680, %v1386, %v1545
      %v1699 = vsel %vm1680, %v1429, %v1547
      %v1700 = vsel %vm1680, %v1389, %v1549
      %vm1701 = vcmask 261120
      %v1702 = vsel %vm1701, %v1681, %v1621
      %v1703 = vsel %vm1701, %v1682, %v1623
      %v1704 = vsel %vm1701, %v1683, %v1625
      %v1705 = vsel %vm1701, %v1684, %v1627
      %v1706 = vsel %vm1701, %v1685, %v1629
      %v1707 = vsel %vm1701, %v1686, %v1631
      %v1708 = vsel %vm1701, %v1687, %v1633
      %v1709 = vsel %vm1701, %v1688, %v1635
      %v1710 = vsel %vm1701, %v1689, %v1637
      %v1711 = vsel %vm1701, %v1690, %v1639
      %v1712 = vsel %vm1701, %v1691, %v1641
      %v1713 = vsel %vm1701, %v1692, %v1643
      %v1714 = vsel %vm1701, %v1693, %v1645
      %v1715 = vsel %vm1701, %v1694, %v1647
      %v1716 = vsel %vm1701, %v1695, %v1649
      %v1717 = vsel %vm1701, %v1696, %v1651
      %v1718 = vsel %vm1701, %v1697, %v1653
      %v1719 = vsel %vm1701, %v1698, %v1655
      %v1720 = vsel %vm1701, %v1699, %v1657
      %v1721 = vsel %vm1701, %v1700, %v1659
      %1738 = vrot.lane.b32.xlu0 %v1704, 48
      %v1739 = vpop.permute.xlu0 %1738
      %1740 = vrot.lane.b32.xlu0 %v1705, 48
      %v1741 = vpop.permute.xlu0 %1740
      %1742 = vrot.lane.b32.xlu0 %v1706, 48
      %v1743 = vpop.permute.xlu0 %1742
      %1744 = vrot.lane.b32.xlu0 %v1707, 48
      %v1745 = vpop.permute.xlu0 %1744
      %1746 = vrot.lane.b32.xlu0 %v1708, 48
      %v1747 = vpop.permute.xlu0 %1746
      %1748 = vrot.lane.b32.xlu0 %v1709, 48
      %v1749 = vpop.permute.xlu0 %1748
      %1750 = vrot.lane.b32.xlu0 %v1710, 48
      %v1751 = vpop.permute.xlu0 %1750
      %1752 = vrot.lane.b32.xlu0 %v1711, 48
      %v1753 = vpop.permute.xlu0 %1752
      %1754 = vrot.lane.b32.xlu0 %v1712, 48
      %v1755 = vpop.permute.xlu0 %1754
      %1756 = vrot.lane.b32.xlu0 %v1713, 48
      %v1757 = vpop.permute.xlu0 %1756
      %1758 = vrot.lane.b32.xlu0 %v1714, 48
      %v1759 = vpop.permute.xlu0 %1758
      %1760 = vrot.lane.b32.xlu0 %v1715, 48
      %v1761 = vpop.permute.xlu0 %1760
      %1762 = vrot.lane.b32.xlu0 %v1716, 48
      %v1763 = vpop.permute.xlu0 %1762
      %1764 = vrot.lane.b32.xlu0 %v1717, 48
      %v1765 = vpop.permute.xlu0 %1764
      %1766 = vrot.lane.b32.xlu0 %v1718, 48
      %v1767 = vpop.permute.xlu0 %1766
      %1768 = vrot.lane.b32.xlu0 %v1719, 48
      %v1769 = vpop.permute.xlu0 %1768
      %1788 = vrot.lane.b32.xlu0 %v1706, 96
      %v1789 = vpop.permute.xlu0 %1788
      %1790 = vrot.lane.b32.xlu0 %v1707, 96
      %v1791 = vpop.permute.xlu0 %1790
      %1792 = vrot.lane.b32.xlu0 %v1708, 96
      %v1793 = vpop.permute.xlu0 %1792
      %1794 = vrot.lane.b32.xlu0 %v1709, 96
      %v1795 = vpop.permute.xlu0 %1794
      %1796 = vrot.lane.b32.xlu0 %v1710, 96
      %v1797 = vpop.permute.xlu0 %1796
      %1798 = vrot.lane.b32.xlu0 %v1711, 96
      %v1799 = vpop.permute.xlu0 %1798
      %1800 = vrot.lane.b32.xlu0 %v1712, 96
      %v1801 = vpop.permute.xlu0 %1800
      %1802 = vrot.lane.b32.xlu0 %v1713, 96
      %v1803 = vpop.permute.xlu0 %1802
      %1804 = vrot.lane.b32.xlu0 %v1714, 96
      %v1805 = vpop.permute.xlu0 %1804
      %1806 = vrot.lane.b32.xlu0 %v1715, 96
      %v1807 = vpop.permute.xlu0 %1806
      %1808 = vrot.lane.b32.xlu0 %v1716, 96
      %v1809 = vpop.permute.xlu0 %1808
      %1810 = vrot.lane.b32.xlu0 %v1717, 96
      %v1811 = vpop.permute.xlu0 %1810
      %1812 = vrot.lane.b32.xlu0 %v1718, 96
      %v1813 = vpop.permute.xlu0 %1812
      %1814 = vrot.lane.b32.xlu0 %v1719, 96
      %v1815 = vpop.permute.xlu0 %1814
      %1816 = vrot.lane.b32.xlu0 %v1720, 96
      %v1817 = vpop.permute.xlu0 %1816
      %1818 = vrot.lane.b32.xlu0 %v1721, 96
      %v1819 = vpop.permute.xlu0 %1818
      %vm1836 = vcmask 392192
      %v1837 = vsel %vm1836, %v1702, %v1739
      %v1838 = vsel %vm1836, %v1703, %v1741
      %v1839 = vsel %vm1836, %v1704, %v1743
      %v1840 = vsel %vm1836, %v1705, %v1745
      %v1841 = vsel %vm1836, %v1706, %v1747
      %v1842 = vsel %vm1836, %v1707, %v1749
      %v1843 = vsel %vm1836, %v1708, %v1751
      %v1844 = vsel %vm1836, %v1709, %v1753
      %v1845 = vsel %vm1836, %v1710, %v1755
      %v1846 = vsel %vm1836, %v1711, %v1757
      %v1847 = vsel %vm1836, %v1712, %v1759
      %v1848 = vsel %vm1836, %v1713, %v1761
      %v1849 = vsel %vm1836, %v1714, %v1763
      %v1850 = vsel %vm1836, %v1715, %v1765
      %v1851 = vsel %vm1836, %v1716, %v1767
      %v1852 = vsel %vm1836, %v1717, %v1769
      %vm1853 = vcmask 785408
      %v1854 = vsel %vm1853, %v1837, %v1789
      %v1855 = vsel %vm1853, %v1838, %v1791
      %v1856 = vsel %vm1853, %v1839, %v1793
      %v1857 = vsel %vm1853, %v1840, %v1795
      %v1858 = vsel %vm1853, %v1841, %v1797
      %v1859 = vsel %vm1853, %v1842, %v1799
      %v1860 = vsel %vm1853, %v1843, %v1801
      %v1861 = vsel %vm1853, %v1844, %v1803
      %v1862 = vsel %vm1853, %v1845, %v1805
      %v1863 = vsel %vm1853, %v1846, %v1807
      %v1864 = vsel %vm1853, %v1847, %v1809
      %v1865 = vsel %vm1853, %v1848, %v1811
      %v1866 = vsel %vm1853, %v1849, %v1813
      %v1867 = vsel %vm1853, %v1850, %v1815
      %v1868 = vsel %vm1853, %v1851, %v1817
      %v1869 = vsel %vm1853, %v1852, %v1819
      %v1870 = vpack.c.bf16 %v1855, %v1854
      %v1871 = vpack.c.bf16 %v1791, %v1789
      %v1872 = vpack.c.bf16 %v1857, %v1856
      %v1873 = vpack.c.bf16 %v1795, %v1793
      %v1874 = vpack.c.bf16 %v1859, %v1858
      %v1875 = vpack.c.bf16 %v1799, %v1797
      %v1876 = vpack.c.bf16 %v1861, %v1860
      %v1877 = vpack.c.bf16 %v1803, %v1801
      %v1878 = vpack.c.bf16 %v1863, %v1862
      %v1879 = vpack.c.bf16 %v1807, %v1805
      %v1880 = vpack.c.bf16 %v1865, %v1864
      %v1881 = vpack.c.bf16 %v1811, %v1809
      %v1882 = vpack.c.bf16 %v1867, %v1866
      %v1883 = vpack.c.bf16 %v1815, %v1813
      %v1884 = vpack.c.bf16 %v1869, %v1868
      %v1885 = vpack.c.bf16 %v1819, %v1817
      %v1886 = vld [vmem:[%s5] sm:$0xf]
      %v1887 = vld [vmem:[%s5 + $0x4] sm:$0xf]
      %v1888 = vld [vmem:[%s5 + $0x8] sm:$0xf]
      %v1889 = vld [vmem:[%s5 + $0xc] sm:$0xf]
      %v1890 = vld [vmem:[%s5 + $0x10] sm:$0xf]
      %v1891 = vld [vmem:[%s5 + $0x14] sm:$0xf]
      %v1892 = vld [vmem:[%s5 + $0x18] sm:$0xf]
      %v1893 = vld [vmem:[%s5 + $0x1c] sm:$0xf]
      %v1894 = vld [vmem:[%s5 + $0x20] sm:$0xf]
      %v1895 = vld [vmem:[%s5 + $0x24] sm:$0xf]
      %v1896 = vld [vmem:[%s5 + $0x28] sm:$0xf]
      %v1897 = vld [vmem:[%s5 + $0x2c] sm:$0xf]
      %v1898 = vld [vmem:[%s5 + $0x30] sm:$0xf]
      %v1899 = vld [vmem:[%s5 + $0x34] sm:$0xf]
      %v1900 = vld [vmem:[%s5 + $0x38] sm:$0xf]
      %v1901 = vld [vmem:[%s5 + $0x3c] sm:$0xf]
      %v1902 = vld [vmem:[%s5 + $0x40] sm:$0xf]
      %v1903 = vld [vmem:[%s5 + $0x44] sm:$0xf]
      %v1904 = vld [vmem:[%s6] sm:$0x1]
      %v1906 = vlaneseq
      %v1907 = vshrl.u32 %v1906, 7
      %v1908 = vsub.s32 0, %v1907
      %v1909 = vrot.slane %v1904, %v1908
      %v1929 = vunpack.c.l.b16 %v1886
      %v1930 = vunpack.c.l.b16 %v1887
      %v1931 = vunpack.c.l.b16 %v1888
      %v1932 = vunpack.c.l.b16 %v1889
      %v1933 = vunpack.c.l.b16 %v1890
      %v1934 = vunpack.c.l.b16 %v1891
      %v1935 = vunpack.c.l.b16 %v1892
      %v1936 = vunpack.c.l.b16 %v1893
      %v1937 = vunpack.c.l.b16 %v1894
      %v1938 = vunpack.c.l.b16 %v1895
      %v1939 = vunpack.c.l.b16 %v1896
      %v1940 = vunpack.c.l.b16 %v1897
      %v1941 = vunpack.c.l.b16 %v1898
      %v1942 = vunpack.c.l.b16 %v1899
      %v1943 = vunpack.c.l.b16 %v1900
      %v1944 = vunpack.c.l.b16 %v1901
      %v1945 = vunpack.c.l.b16 %v1902
      %v1946 = vunpack.c.l.b16 %v1903
      %v1947 = vpack.c.b16 %v1930, %v1929
      %v1948 = vpack.c.b16 %v1932, %v1931
      %v1949 = vpack.c.b16 %v1934, %v1933
      %v1950 = vpack.c.b16 %v1936, %v1935
      %v1951 = vpack.c.b16 %v1938, %v1937
      %v1952 = vpack.c.b16 %v1940, %v1939
      %v1953 = vpack.c.b16 %v1942, %v1941
      %v1954 = vpack.c.b16 %v1944, %v1943
      %v1955 = vpack.c.b16 %v1946, %v1945
      %v1966 = vsel %vm1680, %v1871, 0
      %v1969 = vsel %vm1680, %v1873, 0
      %v1972 = vsel %vm1680, %v1875, 0
      %v1975 = vsel %vm1680, %v1877, 0
      %v1978 = vsel %vm1680, %v1879, 0
      %v1981 = vsel %vm1680, %v1881, 0
      %v1984 = vsel %vm1680, %v1883, 0
      %v1987 = vsel %vm1680, %v1885, 0
      %1989 = vmatprep.subr.bf16.mxu0 0
      %1990 = vmatpush1.bf16.msra.mxu0 %v1954
      %1991 = vmatprep.subr.bf16.mxu0 0
      %1992 = vmatpush1.bf16.msra.mxu0 %v1953
      %1993 = vmatprep.subr.bf16.mxu0 0
      %1994 = vmatpush1.bf16.msra.mxu0 %v1952
      %1995 = vmatprep.subr.bf16.mxu0 0
      %1996 = vmatpush1.bf16.msra.mxu0 %v1951
      %1997 = vmatprep.subr.bf16.mxu0 0
      %1998 = vmatpush1.bf16.msra.mxu0 %v1950
      %1999 = vmatprep.subr.bf16.mxu0 0
      %2000 = vmatpush1.bf16.msra.mxu0 %v1949
      %2001 = vmatprep.subr.bf16.mxu0 0
      %2002 = vmatpush1.bf16.msra.mxu0 %v1948
      %2003 = vmatprep.subr.bf16.mxu0 0
      %2004 = vmatpush1.bf16.msra.mxu0 %v1947
      %2005 = vmatprep.subr.bf16.mxu0 0
      %2006 = vmatpush2.bf16.msra.mxu0 0
      %2007 = vmatprep.subr.bf16.mxu0 0
      %2008 = vmatpush2.bf16.msra.mxu0 0
      %2009 = vmatprep.subr.bf16.mxu0 0
      %2010 = vmatpush2.bf16.msra.mxu0 0
      %2011 = vmatprep.subr.bf16.mxu0 0
      %2012 = vmatpush2.bf16.msra.mxu0 0
      %2013 = vmatprep.subr.bf16.mxu0 0
      %2014 = vmatpush2.bf16.msra.mxu0 0
      %2015 = vmatprep.subr.bf16.mxu0 0
      %2016 = vmatpush2.bf16.msra.mxu0 0
      %2017 = vmatprep.subr.bf16.mxu0 0
      %2018 = vmatpush2.bf16.msra.mxu0 0
      %2019 = vmatprep.subr.bf16.mxu0 0
      %2020 = vmatpush2.bf16.msra.mxu0 %v1955
      %2021 = vmatprep.mubr.bf16.mxu0 %v1966
      %2022 = vmatmul.mubr.bf16.gmra.mxu0 %v1870
      %v2023 = vpop.f32.mrf.mxu0
      %v2024 = vadd.f32 %v1909, %v2023
      %v2025 = vpop.f32.mrf.mxu0
      %v2026 = vpop.f32.mrf.mxu0
      %v2027 = vadd.f32 %v1909, %v2026
      %v2028 = vpop.f32.mrf.mxu0
      %2029 = vmatprep.mubr.bf16.mxu0 %v1969
      %2030 = vmatmul.mubr.bf16.gmra.mxu0 %v1872
      %v2031 = vpop.f32.mrf.mxu0
      %v2032 = vadd.f32 %v1909, %v2031
      %v2033 = vpop.f32.mrf.mxu0
      %v2034 = vpop.f32.mrf.mxu0
      %v2035 = vadd.f32 %v1909, %v2034
      %v2036 = vpop.f32.mrf.mxu0
      %2037 = vmatprep.mubr.bf16.mxu0 %v1972
      %2038 = vmatmul.mubr.bf16.gmra.mxu0 %v1874
      %v2039 = vpop.f32.mrf.mxu0
      %v2040 = vadd.f32 %v1909, %v2039
      %v2041 = vpop.f32.mrf.mxu0
      %v2042 = vpop.f32.mrf.mxu0
      %v2043 = vadd.f32 %v1909, %v2042
      %v2044 = vpop.f32.mrf.mxu0
      %2045 = vmatprep.mubr.bf16.mxu0 %v1975
      %2046 = vmatmul.mubr.bf16.gmra.mxu0 %v1876
      %v2047 = vpop.f32.mrf.mxu0
      %v2048 = vadd.f32 %v1909, %v2047
      %v2049 = vpop.f32.mrf.mxu0
      %v2050 = vpop.f32.mrf.mxu0
      %v2051 = vadd.f32 %v1909, %v2050
      %v2052 = vpop.f32.mrf.mxu0
      %2053 = vmatprep.mubr.bf16.mxu0 %v1978
      %2054 = vmatmul.mubr.bf16.gmra.mxu0 %v1878
      %v2055 = vpop.f32.mrf.mxu0
      %v2056 = vadd.f32 %v1909, %v2055
      %v2057 = vpop.f32.mrf.mxu0
      %v2058 = vpop.f32.mrf.mxu0
      %v2059 = vadd.f32 %v1909, %v2058
      %v2060 = vpop.f32.mrf.mxu0
      %2061 = vmatprep.mubr.bf16.mxu0 %v1981
      %2062 = vmatmul.mubr.bf16.gmra.mxu0 %v1880
      %v2063 = vpop.f32.mrf.mxu0
      %v2064 = vadd.f32 %v1909, %v2063
      %v2065 = vpop.f32.mrf.mxu0
      %v2066 = vpop.f32.mrf.mxu0
      %v2067 = vadd.f32 %v1909, %v2066
      %v2068 = vpop.f32.mrf.mxu0
      %2069 = vmatprep.mubr.bf16.mxu0 %v1984
      %2070 = vmatmul.mubr.bf16.gmra.mxu0 %v1882
      %v2071 = vpop.f32.mrf.mxu0
      %v2072 = vadd.f32 %v1909, %v2071
      %v2073 = vpop.f32.mrf.mxu0
      %v2074 = vpop.f32.mrf.mxu0
      %v2075 = vadd.f32 %v1909, %v2074
      %v2076 = vpop.f32.mrf.mxu0
      %2077 = vmatprep.mubr.bf16.mxu0 %v1987
      %2078 = vmatmul.mubr.bf16.gmra.mxu0 %v1884
      %v2079 = vpop.f32.mrf.mxu0
      %v2080 = vadd.f32 %v1909, %v2079
      %v2081 = vpop.f32.mrf.mxu0
      %v2082 = vpop.f32.mrf.mxu0
      %v2083 = vadd.f32 %v1909, %v2082
      %v2084 = vpop.f32.mrf.mxu0
      %2085 = vdwg.mxu0
      %v2086 = vld [vmem:[%s332] sm:$0x3]
      %v2087 = vld [vmem:[%s342] sm:$0xff]
      %v2088 = vld [vmem:[%s342 + $0x8] sm:$0xff]
      %v2089 = vld [vmem:[%s342 + $0x10] sm:$0xff]
      %v2090 = vld [vmem:[%s342 + $0x18] sm:$0xff]
      %v2091 = vld [vmem:[%s342 + $0x20] sm:$0xff]
      %v2092 = vld [vmem:[%s342 + $0x28] sm:$0xff]
      %v2093 = vld [vmem:[%s342 + $0x30] sm:$0xff]
      %v2094 = vld [vmem:[%s342 + $0x38] sm:$0xff]
      %v2095 = vld [vmem:[%s342 + $0x40] sm:$0xff]
      %v2096 = vld [vmem:[%s342 + $0x48] sm:$0xff]
      %v2097 = vld [vmem:[%s342 + $0x50] sm:$0xff]
      %v2098 = vld [vmem:[%s342 + $0x58] sm:$0xff]
      %v2099 = vld [vmem:[%s342 + $0x60] sm:$0xff]
      %v2100 = vld [vmem:[%s342 + $0x68] sm:$0xff]
      %v2101 = vld [vmem:[%s342 + $0x70] sm:$0xff]
      %v2102 = vld [vmem:[%s342 + $0x78] sm:$0xff]
      %v2103 = vlaneseq
      %v2104 = vshrl.u32 %v2103, 7
      %v2105 = vsub.s32 0, %v2104
      %v2106 = vrot.slane %v2086, %v2105
      %v2107 = vsub.f32 %v2087, %v2106
      %v2108 = vsub.f32 %v2088, %v2106
      %v2109 = vsub.f32 %v2089, %v2106
      %v2110 = vsub.f32 %v2090, %v2106
      %v2111 = vsub.f32 %v2091, %v2106
      %v2112 = vsub.f32 %v2092, %v2106
      %v2113 = vsub.f32 %v2093, %v2106
      %v2114 = vsub.f32 %v2094, %v2106
      %v2115 = vsub.f32 %v2095, %v2106
      %v2116 = vsub.f32 %v2096, %v2106
      %v2117 = vsub.f32 %v2097, %v2106
      %v2118 = vsub.f32 %v2098, %v2106
      %v2119 = vsub.f32 %v2099, %v2106
      %v2120 = vsub.f32 %v2100, %v2106
      %v2121 = vsub.f32 %v2101, %v2106
      %v2122 = vsub.f32 %v2102, %v2106
      %v2123 = vlaneseq
      %v2124 = vshrl.u32 %v2123, 7
      %v2125 = vsub.s32 1, %v2124
      %v2126 = vrot.slane %v2086, %v2125
      %v2127 = vmul.f32 %v2107, %v2126
      %v2128 = vmul.f32 %v2108, %v2126
      %v2129 = vmul.f32 %v2109, %v2126
      %v2130 = vmul.f32 %v2110, %v2126
      %v2131 = vmul.f32 %v2111, %v2126
      %v2132 = vmul.f32 %v2112, %v2126
      %v2133 = vmul.f32 %v2113, %v2126
      %v2134 = vmul.f32 %v2114, %v2126
      %v2135 = vmul.f32 %v2115, %v2126
      %v2136 = vmul.f32 %v2116, %v2126
      %v2137 = vmul.f32 %v2117, %v2126
      %v2138 = vmul.f32 %v2118, %v2126
      %v2139 = vmul.f32 %v2119, %v2126
      %v2140 = vmul.f32 %v2120, %v2126
      %v2141 = vmul.f32 %v2121, %v2126
      %v2142 = vmul.f32 %v2122, %v2126
      %v2143 = vadd.f32 %v2024, 1.0
      %v2144 = vadd.f32 %v2027, 1.0
      %v2145 = vadd.f32 %v2032, 1.0
      %v2146 = vadd.f32 %v2035, 1.0
      %v2147 = vadd.f32 %v2040, 1.0
      %v2148 = vadd.f32 %v2043, 1.0
      %v2149 = vadd.f32 %v2048, 1.0
      %v2150 = vadd.f32 %v2051, 1.0
      %v2151 = vadd.f32 %v2056, 1.0
      %v2152 = vadd.f32 %v2059, 1.0
      %v2153 = vadd.f32 %v2064, 1.0
      %v2154 = vadd.f32 %v2067, 1.0
      %v2155 = vadd.f32 %v2072, 1.0
      %v2156 = vadd.f32 %v2075, 1.0
      %v2157 = vadd.f32 %v2080, 1.0
      %v2158 = vadd.f32 %v2083, 1.0
      %v2159 = vmul.f32 %v2127, %v2143
      %v2160 = vmul.f32 %v2128, %v2144
      %v2161 = vmul.f32 %v2129, %v2145
      %v2162 = vmul.f32 %v2130, %v2146
      %v2163 = vmul.f32 %v2131, %v2147
      %v2164 = vmul.f32 %v2132, %v2148
      %v2165 = vmul.f32 %v2133, %v2149
      %v2166 = vmul.f32 %v2134, %v2150
      %v2167 = vmul.f32 %v2135, %v2151
      %v2168 = vmul.f32 %v2136, %v2152
      %v2169 = vmul.f32 %v2137, %v2153
      %v2170 = vmul.f32 %v2138, %v2154
      %v2171 = vmul.f32 %v2139, %v2155
      %v2172 = vmul.f32 %v2140, %v2156
      %v2173 = vmul.f32 %v2141, %v2157
      %v2174 = vmul.f32 %v2142, %v2158
      %2191 = vrot.lane.b32.xlu0 %v2024, 120
      %v2192 = vpop.permute.xlu0 %2191
      %2193 = vrot.lane.b32.xlu0 %v2027, 120
      %v2194 = vpop.permute.xlu0 %2193
      %2195 = vrot.lane.b32.xlu0 %v2032, 120
      %v2196 = vpop.permute.xlu0 %2195
      %2197 = vrot.lane.b32.xlu0 %v2035, 120
      %v2198 = vpop.permute.xlu0 %2197
      %2199 = vrot.lane.b32.xlu0 %v2040, 120
      %v2200 = vpop.permute.xlu0 %2199
      %2201 = vrot.lane.b32.xlu0 %v2043, 120
      %v2202 = vpop.permute.xlu0 %2201
      %2203 = vrot.lane.b32.xlu0 %v2048, 120
      %v2204 = vpop.permute.xlu0 %2203
      %2205 = vrot.lane.b32.xlu0 %v2051, 120
      %v2206 = vpop.permute.xlu0 %2205
      %2207 = vrot.lane.b32.xlu0 %v2056, 120
      %v2208 = vpop.permute.xlu0 %2207
      %2209 = vrot.lane.b32.xlu0 %v2059, 120
      %v2210 = vpop.permute.xlu0 %2209
      %2211 = vrot.lane.b32.xlu0 %v2064, 120
      %v2212 = vpop.permute.xlu0 %2211
      %2213 = vrot.lane.b32.xlu0 %v2067, 120
      %v2214 = vpop.permute.xlu0 %2213
      %2215 = vrot.lane.b32.xlu0 %v2072, 120
      %v2216 = vpop.permute.xlu0 %2215
      %2217 = vrot.lane.b32.xlu0 %v2075, 120
      %v2218 = vpop.permute.xlu0 %2217
      %2219 = vrot.lane.b32.xlu0 %v2080, 120
      %v2220 = vpop.permute.xlu0 %2219
      %2221 = vrot.lane.b32.xlu0 %v2083, 120
      %v2222 = vpop.permute.xlu0 %2221
      %v2239 = vadd.f32 %v2159, %v2192
      %v2240 = vadd.f32 %v2160, %v2194
      %v2241 = vadd.f32 %v2161, %v2196
      %v2242 = vadd.f32 %v2162, %v2198
      %v2243 = vadd.f32 %v2163, %v2200
      %v2244 = vadd.f32 %v2164, %v2202
      %v2245 = vadd.f32 %v2165, %v2204
      %v2246 = vadd.f32 %v2166, %v2206
      %v2247 = vadd.f32 %v2167, %v2208
      %v2248 = vadd.f32 %v2168, %v2210
      %v2249 = vadd.f32 %v2169, %v2212
      %v2250 = vadd.f32 %v2170, %v2214
      %v2251 = vadd.f32 %v2171, %v2216
      %v2252 = vadd.f32 %v2172, %v2218
      %v2253 = vadd.f32 %v2173, %v2220
      %v2254 = vadd.f32 %v2174, %v2222
      %vm2255 = vcmask 64512
      %2256 = vst.msk [vmem:[%s358] sm:$0xff] %vm2255, %v2239
      %2257 = vst.msk [vmem:[%s358 + $0x8] sm:$0xff] %vm2255, %v2240
      %2258 = vst.msk [vmem:[%s358 + $0x10] sm:$0xff] %vm2255, %v2241
      %2259 = vst.msk [vmem:[%s358 + $0x18] sm:$0xff] %vm2255, %v2242
      %2260 = vst.msk [vmem:[%s358 + $0x20] sm:$0xff] %vm2255, %v2243
      %2261 = vst.msk [vmem:[%s358 + $0x28] sm:$0xff] %vm2255, %v2244
      %2262 = vst.msk [vmem:[%s358 + $0x30] sm:$0xff] %vm2255, %v2245
      %2263 = vst.msk [vmem:[%s358 + $0x38] sm:$0xff] %vm2255, %v2246
      %2264 = vst.msk [vmem:[%s358 + $0x40] sm:$0xff] %vm2255, %v2247
      %2265 = vst.msk [vmem:[%s358 + $0x48] sm:$0xff] %vm2255, %v2248
      %2266 = vst.msk [vmem:[%s358 + $0x50] sm:$0xff] %vm2255, %v2249
      %2267 = vst.msk [vmem:[%s358 + $0x58] sm:$0xff] %vm2255, %v2250
      %2268 = vst.msk [vmem:[%s358 + $0x60] sm:$0xff] %vm2255, %v2251
      %2269 = vst.msk [vmem:[%s358 + $0x68] sm:$0xff] %vm2255, %v2252
      %2270 = vst.msk [vmem:[%s358 + $0x70] sm:$0xff] %vm2255, %v2253
      %2271 = vst.msk [vmem:[%s358 + $0x78] sm:$0xff] %vm2255, %v2254
      %s2272 = smul.u32 8, %s23
      %p2273 = scmp.lt.s32.totalorder %s22, 1
      %s2274 = scalar_select %p2273, %s22, 1
      %p2275 = scmp.lt.s32.totalorder %s2272, 15
      %s2276 = scalar_select %p2275, %s2272, 15
      %s2277 = smul.addr %s2276, 2
      %s2278 = smul.addr %s2274, 32
      %s2279 = sadd.s32 %s2277, %s2278
      %s2280 = smul.addr %s2279, 8
      %s2281 = scalar_lea.vmem %s7, %s2280
      // Predicated region
      $region49: #{spade_forward.3} parent=47 // pred_check
        %p2282 = pneg %p214
      $region50: #{spade_forward.3} parent=47 // pred_check_branch
        %2284 = sbr.rel (%p2282) target = $region52
      $region51: #{spade_forward.3} parent=47 // pred_region
        %s2285 = smul.u32 8, %s23
      $region52: #{spade_forward.3} parent=47 // pred_fallthru
        _
    $region48: #{spade_forward.3} parent=5 // pred_fallthru
      _
    %p2286 = scmp.le.s32.totalorder 2, %s13
    // Predicated region
    $region53: #{spade_forward.3} parent=5 // pred_check
      %p2287 = pneg %p2286
    $region54: #{spade_forward.3} parent=5 // pred_check_branch
      %2289 = sbr.rel (%p2287) target = $region56
    $region55: #{spade_forward.3} parent=5 // pred_region
      %s2290 = ssub.s32 %s13, 2
      // Predicated region
      $region57: #{spade_forward.3} parent=55 // pred_check
        %p2291 = pneg %p220
      $region58: #{spade_forward.3} parent=55 // pred_check_branch
        %2293 = sbr.rel (%p2291) target = $region60
      $region59: #{spade_forward.3} parent=55 // pred_region
        %s2294 = smul.u32 8, %s25
        %p2295 = scmp.lt.s32.totalorder %s24, 1
        %s2296 = scalar_select %p2295, %s24, 1
        %p2297 = scmp.lt.s32.totalorder %s2294, 15
        %s2298 = scalar_select %p2297, %s2294, 15
        %s2299 = smul.addr %s2298, 2
        %s2300 = smul.addr %s2296, 32
        %s2301 = sadd.s32 %s2299, %s2300
        %s2302 = smul.addr %s2301, 8
        %s2303 = scalar_lea.vmem %s7, %s2302
      $region60: #{spade_forward.3} parent=55 // pred_fallthru
        _
    $region56: #{spade_forward.3} parent=5 // pred_fallthru
      _
  $region6: #{spade_forward.3} parent=0 // loop_footer
    %s17 = sadd.s32 1, %s13
  $region7: #{spade_forward.3} parent=0 // loop_footer_branch
    %12 = sbr.rel target = $region3
  $region8: #{spade_forward.3} parent=0 // loop_exit
    _

</llo_original>
